<compile_context>
chip_gen: v6e
topology: v6e:2x2x1
jax: 0.10.0
libtpu: 0.0.40
codegen_flags: <defaults>
</compile_context>

<pallas_src>
import jax
import jax.numpy as jnp
from jax.experimental import pallas as pl
from jax.experimental.pallas import tpu as pltpu


HIDDEN = 32                       # AudioNet hidden_size

# conv configs (spectrogram < 30x30 -> AudioCNN uses the small-input kernel set)
_A_K1, _A_S1, _A_K2, _A_S2 = 5, 2, 3, 2     # audio: conv1 k5s2, conv2 k3s2
_V_K1, _V_S1, _V_K2, _V_S2 = 8, 4, 4, 2     # visual: conv1 k8s4, conv2 k4s2
_A_KIN = _A_K1 * _A_K1 * 2                  # 50  (audio conv1 patch length)
_A_KP = 56                                  # audio patch length padded to sublane multiple
_V_KIN = _V_K1 * _V_K1 * 1                  # 64  (visual conv1 patch length)

# ---- packed-parameter slab layout (static offsets, all 8-row aligned) ----
# 32-lane slab: [a_w1 | v_w1 | a_(conv3+fc) | v_(conv3+fc)]
A_W1_OFF, V_W1_OFF, A_W3_OFF, V_W3_OFF, W32_ROWS = 0, 56, 120, 696, 1272
# 64-lane slab: [a_w2 | v_w2]
A_W2_OFF, V_W2_OFF, W64_ROWS = 0, 288, 800
# 128-lane slab: fused GRU weight rows [0:96) then one bias per row
GRU_W_ROWS = 3 * HIDDEN                     # 96
B_A1_ROW, B_V1_ROW, B_A2_ROW, B_V2_ROW = 96, 97, 98, 99
B_A3_ROW, B_V3_ROW, B_GRU_ROW = 100, 101, 102
W128_ROWS = 104


# ------------------------- fused Pallas kernel -------------------------

def _audionet_kernel(ap_ref, vp_ref, h0_ref, mask_ref,
                     w32_ref, w64_ref, w128_ref, h_out_ref):
    f32 = jnp.float32
    B = h0_ref.shape[0]
    H = h0_ref.shape[1]
    nbp = ap_ref.shape[0] // (_A_K2 * _A_K2)      # padded rows per conv2-kernel-pos block

    def bias_row(row, width):                      # (1, width) bias view from the 128-lane slab
        return w128_ref[row:row + 1, 0:width]

    def branch(p_ref, k2, w1, b1, w2, b2, w3fc, b3fc):
        # conv1 + ReLU: ONE dense matmul over the conv2-expanded im2col patches.
        a1 = jnp.dot(p_ref[...], w1, preferred_element_type=f32) + b1
        a1 = jnp.maximum(a1, 0.0)                                          # (k2*k2*nbp, 32)
        # conv2 im2col: lane-concat the per-(ki,kj) blocks (8-row-aligned sublane slices).
        p2 = jnp.concatenate([a1[i * nbp:(i + 1) * nbp, :]
                              for i in range(k2 * k2)], axis=1)            # (nbp, k2*k2*32)
        h2 = jnp.maximum(jnp.dot(p2, w2, preferred_element_type=f32) + b2, 0.0)  # (nbp, 64)
        # conv3 (1x1 spatial output) + Flatten + Linear folded into ONE matmul.
        p3 = jnp.concatenate([h2[p * B:(p + 1) * B, :] for p in range(9)], axis=1)   # (B, 576)
        return jnp.maximum(jnp.dot(p3, w3fc, preferred_element_type=f32) + b3fc, 0.0)  # (B, 32)

    a_feat = branch(ap_ref, _A_K2,
                    w32_ref[A_W1_OFF:A_W1_OFF + _A_KP, :], bias_row(B_A1_ROW, 32),
                    w64_ref[A_W2_OFF:A_W2_OFF + _A_K2 * _A_K2 * 32, :], bias_row(B_A2_ROW, 64),
                    w32_ref[A_W3_OFF:A_W3_OFF + 576, :], bias_row(B_A3_ROW, 32))
    v_feat = branch(vp_ref, _V_K2,
                    w32_ref[V_W1_OFF:V_W1_OFF + _V_KIN, :], bias_row(B_V1_ROW, 32),
                    w64_ref[V_W2_OFF:V_W2_OFF + _V_K2 * _V_K2 * 32, :], bias_row(B_V2_ROW, 64),
                    w32_ref[V_W3_OFF:V_W3_OFF + 576, :], bias_row(B_V3_ROW, 32))

    # -------- single GRU step (PyTorch gate order r, z, n), hidden pre-masked --------
    hp = h0_ref[...] * mask_ref[...]                                       # (B,H) * (B,1)
    xh = jnp.concatenate([a_feat, v_feat, hp], axis=1)                     # (B, 3H) = [audio|visual|h]
    g = (jnp.dot(xh, w128_ref[0:GRU_W_ROWS, :], preferred_element_type=f32)
         + bias_row(B_GRU_ROW, 4 * H))                                     # (B, 4H)
    r = jax.nn.sigmoid(g[:, 0:H])
    z = jax.nn.sigmoid(g[:, H:2 * H])
    n = jnp.tanh(g[:, 2 * H:3 * H] + r * g[:, 3 * H:4 * H])
    h_out_ref[...] = ((1.0 - z) * n + z * hp).astype(h_out_ref.dtype)


# ------------------------- XLA glue: conv1 im2col on raw observations -------------------------

def _conv1_patches(x, k1, s1, k2, s2, nbp):
    """conv1 im2col, expanded & ordered for the fused in-kernel conv2.

    Row index = kpos * nbp + (pos2 * B + b), where kpos = ki*k2 + kj ranges over conv2's
    kernel and pos2 = i2*3 + j2 over conv2's 3x3 output; rows >= 9*B of each block are
    zero padding so every block starts on an 8-row (sublane) boundary.
    Lane index = (di*k1 + dj)*C + c over conv1's kernel. Only the 8x8 conv1-output
    sub-grid that conv2 actually reads is materialized.
    """
    B, _, _, C = x.shape
    k1sq_c = k1 * k1 * C
    cols = []
    for di in range(k1):
        for dj in range(k1):
            cols.append(x[:, di:di + s1 * 8:s1, dj:dj + s1 * 8:s1, :])     # (B, 8, 8, C)
    patches = jnp.stack(cols, axis=3).reshape(B, 8, 8, k1sq_c)             # (B, 8, 8, K1)

    nb = 9 * B
    blocks = []
    for ki in range(k2):
        for kj in range(k2):
            blk = patches[:, ki:ki + s2 * 3:s2, kj:kj + s2 * 3:s2, :]      # (B, 3, 3, K1)
            blk = jnp.transpose(blk, (1, 2, 0, 3)).reshape(nb, k1sq_c)     # rows = (i2, j2, b)
            blocks.append(jnp.pad(blk, ((0, nbp - nb), (0, 0))))
    return jnp.concatenate(blocks, axis=0)                                 # (k2*k2*nbp, K1)


# ------------------------- forward -------------------------

def audionet_forward(kp, observations, rnn_hidden_states, prev_actions, masks):
    del prev_actions                                    # unused by AudioNet.forward
    spec = observations["spectrogram"].astype(jnp.float32)   # (B, 20, 20, 2)
    depth = observations["depth"].astype(jnp.float32)        # (B, 40, 40, 1)
    B = spec.shape[0]
    nbp = ((9 * B + 7) // 8) * 8

    ap = _conv1_patches(spec, _A_K1, _A_S1, _A_K2, _A_S2, nbp)    # (9*nbp, 50)
    ap = jnp.pad(ap, ((0, 0), (0, _A_KP - _A_KIN)))               # pad K to 56 (zero cols)
    vp = _conv1_patches(depth, _V_K1, _V_S1, _V_K2, _V_S2, nbp)   # (16*nbp, 64)
    h0 = rnn_hidden_states[0]                                     # (B, 32)
    masks = masks.astype(jnp.float32)

    args = (ap, vp, h0, masks, kp["w32"], kp["w64"], kp["w128"])

    flops = 2 * (ap.shape[0] * ap.shape[1] * 32 + nbp * 9 * 32 * 64 + B * 576 * 32
                 + vp.shape[0] * vp.shape[1] * 32 + nbp * 16 * 32 * 64 + B * 576 * 32
                 + B * 96 * 128)
    bytes_accessed = sum(int(a.size) * 4 for a in args) + B * HIDDEN * 4

    h_new = pl.pallas_call(
        _audionet_kernel,
        out_shape=jax.ShapeDtypeStruct((B, HIDDEN), jnp.float32),
        in_specs=[pl.BlockSpec(memory_space=pltpu.MemorySpace.VMEM)] * len(args),
        out_specs=pl.BlockSpec(memory_space=pltpu.MemorySpace.VMEM),
        cost_estimate=pl.CostEstimate(flops=flops,
                                      transcendentals=4 * HIDDEN * B,
                                      bytes_accessed=bytes_accessed),
    )(*args)

    # x2 and the new hidden state of the single-layer GRU are the same values.
    return h_new, h_new[None]


# ------------------------- parameter construction -------------------------

def make_params(key, hidden=HIDDEN):
    """Raw parameters in PyTorch layouts (conv: (O,C,kh,kw), GRU: (3H, in), gate order r,z,n)."""
    ks = jax.random.split(key, 10)
    n = lambda k, shape, s=0.05: (s * jax.random.normal(k, shape)).astype(jnp.float32)
    z = lambda shape: jnp.zeros(shape, jnp.float32)
    return {
        # AudioCNN (spectrogram, 2 in-channels): k5s2 -> k3s2 -> k3s1 -> Linear(32 -> 32)
        "a_conv1_w": n(ks[0], (32, 2, 5, 5)),  "a_conv1_b": z((32,)),
        "a_conv2_w": n(ks[1], (64, 32, 3, 3)), "a_conv2_b": z((64,)),
        "a_conv3_w": n(ks[2], (32, 64, 3, 3)), "a_conv3_b": z((32,)),
        "a_fc_w":    n(ks[3], (hidden, 32)),   "a_fc_b":    z((hidden,)),
        # VisualCNN (depth, 1 in-channel): k8s4 -> k4s2 -> k3s1 -> Linear(32 -> 32)
        "v_conv1_w": n(ks[4], (32, 1, 8, 8)),  "v_conv1_b": z((32,)),
        "v_conv2_w": n(ks[5], (64, 32, 4, 4)), "v_conv2_b": z((64,)),
        "v_conv3_w": n(ks[6], (32, 64, 3, 3)), "v_conv3_b": z((32,)),
        "v_fc_w":    n(ks[7], (hidden, 32)),   "v_fc_b":    z((hidden,)),
        # GRU (PyTorch layout): weight_ih (3H, D=2H), weight_hh (3H, H)
        "gru_w_ih": n(ks[8], (3 * hidden, 2 * hidden), 0.1),
        "gru_w_hh": n(ks[9], (3 * hidden, hidden), 0.1),
        "gru_b_ih": z((3 * hidden,)),
        "gru_b_hh": z((3 * hidden,)),
    }


def _spatial_major(w):
    """(O, C, kh, kw) -> (kh*kw*C, O): row order (ki, kj, c)."""
    return jnp.transpose(w, (2, 3, 1, 0)).reshape(-1, w.shape[0])


def prepare_params(raw, hidden=HIDDEN):
    """Precompute matmul-ready layouts ONCE and pack them into 3 DMA slabs."""
    f32 = jnp.float32
    H = hidden

    a_w1 = _spatial_major(raw["a_conv1_w"])            # (50, 32)
    v_w1 = _spatial_major(raw["v_conv1_w"])            # (64, 32)
    a_w2 = _spatial_major(raw["a_conv2_w"])            # (288, 64)
    v_w2 = _spatial_major(raw["v_conv2_w"])            # (512, 64)
    a_w3 = _spatial_major(raw["a_conv3_w"])            # (576, 32)
    v_w3 = _spatial_major(raw["v_conv3_w"])            # (576, 32)

    # conv3 (no ReLU) -> Flatten -> Linear folded into a single matmul per branch.
    a_w3fc = a_w3 @ raw["a_fc_w"].T                    # (576, 32)
    v_w3fc = v_w3 @ raw["v_fc_w"].T
    a_b3fc = raw["a_conv3_b"] @ raw["a_fc_w"].T + raw["a_fc_b"]
    v_b3fc = raw["v_conv3_b"] @ raw["v_fc_w"].T + raw["v_fc_b"]

    # ---- 32-lane weight slab ----
    w32 = jnp.zeros((W32_ROWS, 32), f32)
    w32 = w32.at[A_W1_OFF:A_W1_OFF + a_w1.shape[0]].set(a_w1)   # rows 50..55 stay zero (K pad)
    w32 = w32.at[V_W1_OFF:V_W1_OFF + v_w1.shape[0]].set(v_w1)
    w32 = w32.at[A_W3_OFF:A_W3_OFF + 576].set(a_w3fc)
    w32 = w32.at[V_W3_OFF:V_W3_OFF + 576].set(v_w3fc)

    # ---- 64-lane weight slab ----
    w64 = jnp.zeros((W64_ROWS, 64), f32)
    w64 = w64.at[A_W2_OFF:A_W2_OFF + 288].set(a_w2)
    w64 = w64.at[V_W2_OFF:V_W2_OFF + 512].set(v_w2)

    # ---- 128-lane slab: fused GRU weight (rows 0:96) + all biases (one per row) ----
    wih, whh = raw["gru_w_ih"], raw["gru_w_hh"]        # (3H, 2H), (3H, H); gates r,z,n
    w128 = jnp.zeros((W128_ROWS, 128), f32)
    # columns [0:H)=r, [H:2H)=z act on [x1 | hp]; [2H:3H)=W_in x; [3H:4H)=W_hn h (kept separable)
    w128 = w128.at[0:2 * H, 0:H].set(wih[0:H].T)
    w128 = w128.at[2 * H:3 * H, 0:H].set(whh[0:H].T)
    w128 = w128.at[0:2 * H, H:2 * H].set(wih[H:2 * H].T)
    w128 = w128.at[2 * H:3 * H, H:2 * H].set(whh[H:2 * H].T)
    w128 = w128.at[0:2 * H, 2 * H:3 * H].set(wih[2 * H:3 * H].T)
    w128 = w128.at[2 * H:3 * H, 3 * H:4 * H].set(whh[2 * H:3 * H].T)

    bih, bhh = raw["gru_b_ih"], raw["gru_b_hh"]
    gru_bias = jnp.concatenate([bih[0:H] + bhh[0:H], bih[H:2 * H] + bhh[H:2 * H],
                                bih[2 * H:3 * H], bhh[2 * H:3 * H]])
    w128 = w128.at[B_A1_ROW, 0:32].set(raw["a_conv1_b"])
    w128 = w128.at[B_V1_ROW, 0:32].set(raw["v_conv1_b"])
    w128 = w128.at[B_A2_ROW, 0:64].set(raw["a_conv2_b"])
    w128 = w128.at[B_V2_ROW, 0:64].set(raw["v_conv2_b"])
    w128 = w128.at[B_A3_ROW, 0:32].set(a_b3fc)
    w128 = w128.at[B_V3_ROW, 0:32].set(v_b3fc)
    w128 = w128.at[B_GRU_ROW, 0:128].set(gru_bias)

    return {"w32": w32, "w64": w64, "w128": w128}


# ------------------------- main -------------------------

if __name__ == "__main__":
    B = 2
    key = jax.random.PRNGKey(0)
    kparam_key, kspec, kdepth, khid = jax.random.split(key, 4)

    raw_params = make_params(kparam_key)
    kparams = prepare_params(raw_params)               # layouts + slab packing done once

    observations = {
        "spectrogram": jax.random.normal(kspec, (B, 20, 20, 2), jnp.float32),
        "depth": jax.random.uniform(kdepth, (B, 40, 40, 1), jnp.float32),
    }
    rnn_hidden_states = jax.random.normal(khid, (1, B, HIDDEN), jnp.float32)
    prev_actions = jnp.zeros((B, 1), jnp.int32)         # unused by forward
    masks = jnp.ones((B, 1), jnp.float32)

    fwd = jax.jit(audionet_forward)
    x2, new_hidden = fwd(kparams, observations, rnn_hidden_states, prev_actions, masks)
    jax.block_until_ready((x2, new_hidden))

    # mirrors `assert not torch.isnan(x2).any().item()`
    assert not bool(jnp.isnan(x2).any()), "NaN in AudioNet output"
    assert x2.shape == (B, HIDDEN) and new_hidden.shape == (1, B, HIDDEN)
    print("KERNEL_OK")
</pallas_src>

<mosaic_0001>
module attributes {stable_mosaic.version = 11 : i64} {
  func.func @_audionet_kernel(%arg0: memref<216x56xf32, #tpu.memory_space<vmem>>, %arg1: memref<384x64xf32, #tpu.memory_space<vmem>>, %arg2: memref<2x32xf32, #tpu.memory_space<vmem>>, %arg3: memref<2x1xf32, #tpu.memory_space<vmem>>, %arg4: memref<1272x32xf32, #tpu.memory_space<vmem>>, %arg5: memref<800x64xf32, #tpu.memory_space<vmem>>, %arg6: memref<104x128xf32, #tpu.memory_space<vmem>>, %arg7: memref<2x32xf32, #tpu.memory_space<vmem>>) attributes {dimension_semantics = [], scalar_prefetch = 0 : i64, scratch_operands = 0 : i64, tpu.core_type = #tpu.core_type<tc>} {
    %c0 = arith.constant 0 : index
    %c0_0 = arith.constant 0 : index
    %0 = vector.load %arg4[%c0, %c0_0] : memref<1272x32xf32, #tpu.memory_space<vmem>>, vector<56x32xf32>
    %c96 = arith.constant 96 : index
    %c0_1 = arith.constant 0 : index
    %1 = vector.load %arg6[%c96, %c0_1] : memref<104x128xf32, #tpu.memory_space<vmem>>, vector<1x32xf32>
    %c0_2 = arith.constant 0 : index
    %c0_3 = arith.constant 0 : index
    %2 = vector.load %arg5[%c0_2, %c0_3] : memref<800x64xf32, #tpu.memory_space<vmem>>, vector<288x64xf32>
    %c98 = arith.constant 98 : index
    %c0_4 = arith.constant 0 : index
    %3 = vector.load %arg6[%c98, %c0_4] : memref<104x128xf32, #tpu.memory_space<vmem>>, vector<1x64xf32>
    %c120 = arith.constant 120 : index
    %c0_5 = arith.constant 0 : index
    %4 = vector.load %arg4[%c120, %c0_5] : memref<1272x32xf32, #tpu.memory_space<vmem>>, vector<576x32xf32>
    %c100 = arith.constant 100 : index
    %c0_6 = arith.constant 0 : index
    %5 = vector.load %arg6[%c100, %c0_6] : memref<104x128xf32, #tpu.memory_space<vmem>>, vector<1x32xf32>
    %c0_7 = arith.constant 0 : index
    %c0_8 = arith.constant 0 : index
    %6 = vector.load %arg0[%c0_7, %c0_8] : memref<216x56xf32, #tpu.memory_space<vmem>>, vector<216x56xf32>
    %cst = arith.constant dense<0.000000e+00> : vector<216x32xf32>
    %7 = tpu.matmul %6, %0, %cst {dimension_numbers = #tpu.dot_dimension_numbers<[1], [0], [0], [1], [0, 0, 1, 1], [], []>} : vector<216x56xf32>, vector<56x32xf32>, vector<216x32xf32> -> vector<216x32xf32>
    %8 = vector.broadcast %1 : vector<1x32xf32> to vector<216x32xf32>
    %9 = arith.addf %7, %8 : vector<216x32xf32>
    %cst_9 = arith.constant 0.000000e+00 : f32
    %10 = vector.broadcast %cst_9 : f32 to vector<216x32xf32>
    %11 = arith.maximumf %9, %10 : vector<216x32xf32>
    %12 = vector.extract_strided_slice %11 {offsets = [0, 0], sizes = [24, 32], strides = [1, 1]} : vector<216x32xf32> to vector<24x32xf32>
    %13 = vector.extract_strided_slice %11 {offsets = [24, 0], sizes = [24, 32], strides = [1, 1]} : vector<216x32xf32> to vector<24x32xf32>
    %14 = vector.extract_strided_slice %11 {offsets = [48, 0], sizes = [24, 32], strides = [1, 1]} : vector<216x32xf32> to vector<24x32xf32>
    %15 = vector.extract_strided_slice %11 {offsets = [72, 0], sizes = [24, 32], strides = [1, 1]} : vector<216x32xf32> to vector<24x32xf32>
    %16 = vector.extract_strided_slice %11 {offsets = [96, 0], sizes = [24, 32], strides = [1, 1]} : vector<216x32xf32> to vector<24x32xf32>
    %17 = vector.extract_strided_slice %11 {offsets = [120, 0], sizes = [24, 32], strides = [1, 1]} : vector<216x32xf32> to vector<24x32xf32>
    %18 = vector.extract_strided_slice %11 {offsets = [144, 0], sizes = [24, 32], strides = [1, 1]} : vector<216x32xf32> to vector<24x32xf32>
    %19 = vector.extract_strided_slice %11 {offsets = [168, 0], sizes = [24, 32], strides = [1, 1]} : vector<216x32xf32> to vector<24x32xf32>
    %20 = vector.extract_strided_slice %11 {offsets = [192, 0], sizes = [24, 32], strides = [1, 1]} : vector<216x32xf32> to vector<24x32xf32>
    %21 = tpu.concatenate %12, %13, %14, %15, %16, %17, %18, %19, %20 in 1 : vector<24x32xf32>, vector<24x32xf32>, vector<24x32xf32>, vector<24x32xf32>, vector<24x32xf32>, vector<24x32xf32>, vector<24x32xf32>, vector<24x32xf32>, vector<24x32xf32> -> vector<24x288xf32>
    %cst_10 = arith.constant dense<0.000000e+00> : vector<24x64xf32>
    %22 = tpu.matmul %21, %2, %cst_10 {dimension_numbers = #tpu.dot_dimension_numbers<[1], [0], [0], [1], [0, 0, 1, 1], [], []>} : vector<24x288xf32>, vector<288x64xf32>, vector<24x64xf32> -> vector<24x64xf32>
    %23 = vector.broadcast %3 : vector<1x64xf32> to vector<24x64xf32>
    %24 = arith.addf %22, %23 : vector<24x64xf32>
    %cst_11 = arith.constant 0.000000e+00 : f32
    %25 = vector.broadcast %cst_11 : f32 to vector<24x64xf32>
    %26 = arith.maximumf %24, %25 : vector<24x64xf32>
    %27 = vector.extract_strided_slice %26 {offsets = [0, 0], sizes = [2, 64], strides = [1, 1]} : vector<24x64xf32> to vector<2x64xf32>
    %28 = vector.extract_strided_slice %26 {offsets = [2, 0], sizes = [2, 64], strides = [1, 1]} : vector<24x64xf32> to vector<2x64xf32>
    %29 = vector.extract_strided_slice %26 {offsets = [4, 0], sizes = [2, 64], strides = [1, 1]} : vector<24x64xf32> to vector<2x64xf32>
    %30 = vector.extract_strided_slice %26 {offsets = [6, 0], sizes = [2, 64], strides = [1, 1]} : vector<24x64xf32> to vector<2x64xf32>
    %31 = vector.extract_strided_slice %26 {offsets = [8, 0], sizes = [2, 64], strides = [1, 1]} : vector<24x64xf32> to vector<2x64xf32>
    %32 = vector.extract_strided_slice %26 {offsets = [10, 0], sizes = [2, 64], strides = [1, 1]} : vector<24x64xf32> to vector<2x64xf32>
    %33 = vector.extract_strided_slice %26 {offsets = [12, 0], sizes = [2, 64], strides = [1, 1]} : vector<24x64xf32> to vector<2x64xf32>
    %34 = vector.extract_strided_slice %26 {offsets = [14, 0], sizes = [2, 64], strides = [1, 1]} : vector<24x64xf32> to vector<2x64xf32>
    %35 = vector.extract_strided_slice %26 {offsets = [16, 0], sizes = [2, 64], strides = [1, 1]} : vector<24x64xf32> to vector<2x64xf32>
    %36 = tpu.concatenate %27, %28, %29, %30, %31, %32, %33, %34, %35 in 1 : vector<2x64xf32>, vector<2x64xf32>, vector<2x64xf32>, vector<2x64xf32>, vector<2x64xf32>, vector<2x64xf32>, vector<2x64xf32>, vector<2x64xf32>, vector<2x64xf32> -> vector<2x576xf32>
    %cst_12 = arith.constant dense<0.000000e+00> : vector<2x32xf32>
    %37 = tpu.matmul %36, %4, %cst_12 {dimension_numbers = #tpu.dot_dimension_numbers<[1], [0], [0], [1], [0, 0, 1, 1], [], []>} : vector<2x576xf32>, vector<576x32xf32>, vector<2x32xf32> -> vector<2x32xf32>
    %38 = vector.broadcast %5 : vector<1x32xf32> to vector<2x32xf32>
    %39 = arith.addf %37, %38 : vector<2x32xf32>
    %cst_13 = arith.constant 0.000000e+00 : f32
    %40 = vector.broadcast %cst_13 : f32 to vector<2x32xf32>
    %41 = arith.maximumf %39, %40 : vector<2x32xf32>
    %c56 = arith.constant 56 : index
    %c0_14 = arith.constant 0 : index
    %42 = vector.load %arg4[%c56, %c0_14] : memref<1272x32xf32, #tpu.memory_space<vmem>>, vector<64x32xf32>
    %c97 = arith.constant 97 : index
    %c0_15 = arith.constant 0 : index
    %43 = vector.load %arg6[%c97, %c0_15] : memref<104x128xf32, #tpu.memory_space<vmem>>, vector<1x32xf32>
    %c288 = arith.constant 288 : index
    %c0_16 = arith.constant 0 : index
    %44 = vector.load %arg5[%c288, %c0_16] : memref<800x64xf32, #tpu.memory_space<vmem>>, vector<512x64xf32>
    %c99 = arith.constant 99 : index
    %c0_17 = arith.constant 0 : index
    %45 = vector.load %arg6[%c99, %c0_17] : memref<104x128xf32, #tpu.memory_space<vmem>>, vector<1x64xf32>
    %c696 = arith.constant 696 : index
    %c0_18 = arith.constant 0 : index
    %46 = vector.load %arg4[%c696, %c0_18] : memref<1272x32xf32, #tpu.memory_space<vmem>>, vector<576x32xf32>
    %c101 = arith.constant 101 : index
    %c0_19 = arith.constant 0 : index
    %47 = vector.load %arg6[%c101, %c0_19] : memref<104x128xf32, #tpu.memory_space<vmem>>, vector<1x32xf32>
    %c0_20 = arith.constant 0 : index
    %c0_21 = arith.constant 0 : index
    %48 = vector.load %arg1[%c0_20, %c0_21] : memref<384x64xf32, #tpu.memory_space<vmem>>, vector<384x64xf32>
    %cst_22 = arith.constant dense<0.000000e+00> : vector<384x32xf32>
    %49 = tpu.matmul %48, %42, %cst_22 {dimension_numbers = #tpu.dot_dimension_numbers<[1], [0], [0], [1], [0, 0, 1, 1], [], []>} : vector<384x64xf32>, vector<64x32xf32>, vector<384x32xf32> -> vector<384x32xf32>
    %50 = vector.broadcast %43 : vector<1x32xf32> to vector<384x32xf32>
    %51 = arith.addf %49, %50 : vector<384x32xf32>
    %cst_23 = arith.constant 0.000000e+00 : f32
    %52 = vector.broadcast %cst_23 : f32 to vector<384x32xf32>
    %53 = arith.maximumf %51, %52 : vector<384x32xf32>
    %54 = vector.extract_strided_slice %53 {offsets = [0, 0], sizes = [24, 32], strides = [1, 1]} : vector<384x32xf32> to vector<24x32xf32>
    %55 = vector.extract_strided_slice %53 {offsets = [24, 0], sizes = [24, 32], strides = [1, 1]} : vector<384x32xf32> to vector<24x32xf32>
    %56 = vector.extract_strided_slice %53 {offsets = [48, 0], sizes = [24, 32], strides = [1, 1]} : vector<384x32xf32> to vector<24x32xf32>
    %57 = vector.extract_strided_slice %53 {offsets = [72, 0], sizes = [24, 32], strides = [1, 1]} : vector<384x32xf32> to vector<24x32xf32>
    %58 = vector.extract_strided_slice %53 {offsets = [96, 0], sizes = [24, 32], strides = [1, 1]} : vector<384x32xf32> to vector<24x32xf32>
    %59 = vector.extract_strided_slice %53 {offsets = [120, 0], sizes = [24, 32], strides = [1, 1]} : vector<384x32xf32> to vector<24x32xf32>
    %60 = vector.extract_strided_slice %53 {offsets = [144, 0], sizes = [24, 32], strides = [1, 1]} : vector<384x32xf32> to vector<24x32xf32>
    %61 = vector.extract_strided_slice %53 {offsets = [168, 0], sizes = [24, 32], strides = [1, 1]} : vector<384x32xf32> to vector<24x32xf32>
    %62 = vector.extract_strided_slice %53 {offsets = [192, 0], sizes = [24, 32], strides = [1, 1]} : vector<384x32xf32> to vector<24x32xf32>
    %63 = vector.extract_strided_slice %53 {offsets = [216, 0], sizes = [24, 32], strides = [1, 1]} : vector<384x32xf32> to vector<24x32xf32>
    %64 = vector.extract_strided_slice %53 {offsets = [240, 0], sizes = [24, 32], strides = [1, 1]} : vector<384x32xf32> to vector<24x32xf32>
    %65 = vector.extract_strided_slice %53 {offsets = [264, 0], sizes = [24, 32], strides = [1, 1]} : vector<384x32xf32> to vector<24x32xf32>
    %66 = vector.extract_strided_slice %53 {offsets = [288, 0], sizes = [24, 32], strides = [1, 1]} : vector<384x32xf32> to vector<24x32xf32>
    %67 = vector.extract_strided_slice %53 {offsets = [312, 0], sizes = [24, 32], strides = [1, 1]} : vector<384x32xf32> to vector<24x32xf32>
    %68 = vector.extract_strided_slice %53 {offsets = [336, 0], sizes = [24, 32], strides = [1, 1]} : vector<384x32xf32> to vector<24x32xf32>
    %69 = vector.extract_strided_slice %53 {offsets = [360, 0], sizes = [24, 32], strides = [1, 1]} : vector<384x32xf32> to vector<24x32xf32>
    %70 = tpu.concatenate %54, %55, %56, %57, %58, %59, %60, %61, %62, %63, %64, %65, %66, %67, %68, %69 in 1 : vector<24x32xf32>, vector<24x32xf32>, vector<24x32xf32>, vector<24x32xf32>, vector<24x32xf32>, vector<24x32xf32>, vector<24x32xf32>, vector<24x32xf32>, vector<24x32xf32>, vector<24x32xf32>, vector<24x32xf32>, vector<24x32xf32>, vector<24x32xf32>, vector<24x32xf32>, vector<24x32xf32>, vector<24x32xf32> -> vector<24x512xf32>
    %cst_24 = arith.constant dense<0.000000e+00> : vector<24x64xf32>
    %71 = tpu.matmul %70, %44, %cst_24 {dimension_numbers = #tpu.dot_dimension_numbers<[1], [0], [0], [1], [0, 0, 1, 1], [], []>} : vector<24x512xf32>, vector<512x64xf32>, vector<24x64xf32> -> vector<24x64xf32>
    %72 = vector.broadcast %45 : vector<1x64xf32> to vector<24x64xf32>
    %73 = arith.addf %71, %72 : vector<24x64xf32>
    %cst_25 = arith.constant 0.000000e+00 : f32
    %74 = vector.broadcast %cst_25 : f32 to vector<24x64xf32>
    %75 = arith.maximumf %73, %74 : vector<24x64xf32>
    %76 = vector.extract_strided_slice %75 {offsets = [0, 0], sizes = [2, 64], strides = [1, 1]} : vector<24x64xf32> to vector<2x64xf32>
    %77 = vector.extract_strided_slice %75 {offsets = [2, 0], sizes = [2, 64], strides = [1, 1]} : vector<24x64xf32> to vector<2x64xf32>
    %78 = vector.extract_strided_slice %75 {offsets = [4, 0], sizes = [2, 64], strides = [1, 1]} : vector<24x64xf32> to vector<2x64xf32>
    %79 = vector.extract_strided_slice %75 {offsets = [6, 0], sizes = [2, 64], strides = [1, 1]} : vector<24x64xf32> to vector<2x64xf32>
    %80 = vector.extract_strided_slice %75 {offsets = [8, 0], sizes = [2, 64], strides = [1, 1]} : vector<24x64xf32> to vector<2x64xf32>
    %81 = vector.extract_strided_slice %75 {offsets = [10, 0], sizes = [2, 64], strides = [1, 1]} : vector<24x64xf32> to vector<2x64xf32>
    %82 = vector.extract_strided_slice %75 {offsets = [12, 0], sizes = [2, 64], strides = [1, 1]} : vector<24x64xf32> to vector<2x64xf32>
    %83 = vector.extract_strided_slice %75 {offsets = [14, 0], sizes = [2, 64], strides = [1, 1]} : vector<24x64xf32> to vector<2x64xf32>
    %84 = vector.extract_strided_slice %75 {offsets = [16, 0], sizes = [2, 64], strides = [1, 1]} : vector<24x64xf32> to vector<2x64xf32>
    %85 = tpu.concatenate %76, %77, %78, %79, %80, %81, %82, %83, %84 in 1 : vector<2x64xf32>, vector<2x64xf32>, vector<2x64xf32>, vector<2x64xf32>, vector<2x64xf32>, vector<2x64xf32>, vector<2x64xf32>, vector<2x64xf32>, vector<2x64xf32> -> vector<2x576xf32>
    %cst_26 = arith.constant dense<0.000000e+00> : vector<2x32xf32>
    %86 = tpu.matmul %85, %46, %cst_26 {dimension_numbers = #tpu.dot_dimension_numbers<[1], [0], [0], [1], [0, 0, 1, 1], [], []>} : vector<2x576xf32>, vector<576x32xf32>, vector<2x32xf32> -> vector<2x32xf32>
    %87 = vector.broadcast %47 : vector<1x32xf32> to vector<2x32xf32>
    %88 = arith.addf %86, %87 : vector<2x32xf32>
    %cst_27 = arith.constant 0.000000e+00 : f32
    %89 = vector.broadcast %cst_27 : f32 to vector<2x32xf32>
    %90 = arith.maximumf %88, %89 : vector<2x32xf32>
    %c0_28 = arith.constant 0 : index
    %c0_29 = arith.constant 0 : index
    %91 = vector.load %arg2[%c0_28, %c0_29] : memref<2x32xf32, #tpu.memory_space<vmem>>, vector<2x32xf32>
    %c0_30 = arith.constant 0 : index
    %c0_31 = arith.constant 0 : index
    %92 = vector.load %arg3[%c0_30, %c0_31] : memref<2x1xf32, #tpu.memory_space<vmem>>, vector<2x1xf32>
    %93 = vector.broadcast %92 : vector<2x1xf32> to vector<2x32xf32>
    %94 = arith.mulf %91, %93 : vector<2x32xf32>
    %95 = tpu.concatenate %41, %90, %94 in 1 : vector<2x32xf32>, vector<2x32xf32>, vector<2x32xf32> -> vector<2x96xf32>
    %c0_32 = arith.constant 0 : index
    %c0_33 = arith.constant 0 : index
    %96 = vector.load %arg6[%c0_32, %c0_33] : memref<104x128xf32, #tpu.memory_space<vmem>>, vector<96x128xf32>
    %cst_34 = arith.constant dense<0.000000e+00> : vector<2x128xf32>
    %97 = tpu.matmul %95, %96, %cst_34 {dimension_numbers = #tpu.dot_dimension_numbers<[1], [0], [0], [1], [0, 0, 1, 1], [], []>} : vector<2x96xf32>, vector<96x128xf32>, vector<2x128xf32> -> vector<2x128xf32>
    %c102 = arith.constant 102 : index
    %c0_35 = arith.constant 0 : index
    %98 = vector.load %arg6[%c102, %c0_35] : memref<104x128xf32, #tpu.memory_space<vmem>>, vector<1x128xf32>
    %99 = vector.broadcast %98 : vector<1x128xf32> to vector<2x128xf32>
    %100 = arith.addf %97, %99 : vector<2x128xf32>
    %101 = vector.extract_strided_slice %100 {offsets = [0, 0], sizes = [2, 32], strides = [1, 1]} : vector<2x128xf32> to vector<2x32xf32>
    %102 = arith.negf %101 : vector<2x32xf32>
    %103 = math.exp %102 : vector<2x32xf32>
    %cst_36 = arith.constant 1.000000e+00 : f32
    %104 = vector.broadcast %cst_36 : f32 to vector<2x32xf32>
    %105 = arith.addf %104, %103 : vector<2x32xf32>
    %106 = arith.divf %104, %105 : vector<2x32xf32>
    %107 = vector.extract_strided_slice %100 {offsets = [0, 32], sizes = [2, 32], strides = [1, 1]} : vector<2x128xf32> to vector<2x32xf32>
    %108 = arith.negf %107 : vector<2x32xf32>
    %109 = math.exp %108 : vector<2x32xf32>
    %cst_37 = arith.constant 1.000000e+00 : f32
    %110 = vector.broadcast %cst_37 : f32 to vector<2x32xf32>
    %111 = arith.addf %110, %109 : vector<2x32xf32>
    %112 = arith.divf %110, %111 : vector<2x32xf32>
    %113 = vector.extract_strided_slice %100 {offsets = [0, 64], sizes = [2, 32], strides = [1, 1]} : vector<2x128xf32> to vector<2x32xf32>
    %114 = vector.extract_strided_slice %100 {offsets = [0, 96], sizes = [2, 32], strides = [1, 1]} : vector<2x128xf32> to vector<2x32xf32>
    %115 = arith.mulf %106, %114 : vector<2x32xf32>
    %116 = arith.addf %113, %115 : vector<2x32xf32>
    %117 = math.tanh %116 : vector<2x32xf32>
    %cst_38 = arith.constant 1.000000e+00 : f32
    %118 = vector.broadcast %cst_38 : f32 to vector<2x32xf32>
    %119 = arith.subf %118, %112 : vector<2x32xf32>
    %120 = arith.mulf %119, %117 : vector<2x32xf32>
    %121 = arith.mulf %112, %94 : vector<2x32xf32>
    %122 = arith.addf %120, %121 : vector<2x32xf32>
    %c0_39 = arith.constant 0 : index
    %c0_40 = arith.constant 0 : index
    %123 = vector.load %arg7[%c0_39, %c0_40] : memref<2x32xf32, #tpu.memory_space<vmem>>, vector<2x32xf32>
    tpu.vector_store %arg7[%c0_39, %c0_40], %122 {strides = array<i32>} : memref<2x32xf32, #tpu.memory_space<vmem>>, vector<2x32xf32>,
    return
  }
}

</mosaic_0001>

<llo_original>
// kernel: audionet_forward.1
$region0: #{audionet_forward.1}
  #allocation0 [shape = 'u32[]', space=smem, size = 0x4, offset = 0x4, fixed_abs, tag = 'smem constant byte address 0x4 - core index']
  #allocation1 [shape = 'u32[144,128]{1,0:T(1,128)}', space=vmem, size = 0x12000, scoped, tag = 'internal scratch']
  %s0 = inlined_call_operand.vmem [shape: f32[216,56], index: 0, kind: input, shape index: {}]
  %s1 = inlined_call_operand.vmem [shape: f32[384,64], index: 1, kind: input, shape index: {}]
  %s2 = inlined_call_operand.vmem [shape: f32[2,32], index: 2, kind: input, shape index: {}]
  %s3 = inlined_call_operand.vmem [shape: f32[2,1], index: 3, kind: input, shape index: {}]
  %s4 = inlined_call_operand.vmem [shape: f32[1272,32], index: 4, kind: input, shape index: {}]
  %s5 = inlined_call_operand.vmem [shape: f32[800,64], index: 5, kind: input, shape index: {}]
  %s6 = inlined_call_operand.vmem [shape: f32[104,128], index: 6, kind: input, shape index: {}]
  %s7 = inlined_call_operand.vmem [shape: f32[2,32], index: 7, kind: output, shape index: {}]
  %s8 = sld [smem:[#allocation0]]
  $region38: #{audionet_forward.1} parent=0
    _
  %s10 = ssub.s32 1, %s8
  %s11 = scalar_select 0, %s10, %s8
  // Predicated region
  $region2: #{audionet_forward.1} parent=0 // pred_check
    _
  $region3: #{audionet_forward.1} parent=0 // pred_check_branch
    %13 = sbr.rel (0) target = $region5
  $region4: #{audionet_forward.1} parent=0 // pred_region
    _
  $region5: #{audionet_forward.1} parent=0 // pred_fallthru
    _
  // Predicated region
  $region6: #{audionet_forward.1} parent=0 // pred_check
    _
  $region7: #{audionet_forward.1} parent=0 // pred_check_branch
    %15 = sbr.rel (0) target = $region9
  $region8: #{audionet_forward.1} parent=0 // pred_region
    _
  $region9: #{audionet_forward.1} parent=0 // pred_fallthru
    _
  // Predicated region
  $region10: #{audionet_forward.1} parent=0 // pred_check
    _
  $region11: #{audionet_forward.1} parent=0 // pred_check_branch
    %17 = sbr.rel (0) target = $region13
  $region12: #{audionet_forward.1} parent=0 // pred_region
    _
  $region13: #{audionet_forward.1} parent=0 // pred_fallthru
    _
  // Predicated region
  $region14: #{audionet_forward.1} parent=0 // pred_check
    _
  $region15: #{audionet_forward.1} parent=0 // pred_check_branch
    %19 = sbr.rel (0) target = $region17
  $region16: #{audionet_forward.1} parent=0 // pred_region
    _
  $region17: #{audionet_forward.1} parent=0 // pred_fallthru
    _
  // Predicated region
  $region18: #{audionet_forward.1} parent=0 // pred_check
    _
  $region19: #{audionet_forward.1} parent=0 // pred_check_branch
    %21 = sbr.rel (0) target = $region21
  $region20: #{audionet_forward.1} parent=0 // pred_region
    _
  $region21: #{audionet_forward.1} parent=0 // pred_fallthru
    _
  // Predicated region
  $region22: #{audionet_forward.1} parent=0 // pred_check
    _
  $region23: #{audionet_forward.1} parent=0 // pred_check_branch
    %23 = sbr.rel (0) target = $region25
  $region24: #{audionet_forward.1} parent=0 // pred_region
    _
  $region25: #{audionet_forward.1} parent=0 // pred_fallthru
    _
  // Predicated region
  $region26: #{audionet_forward.1} parent=0 // pred_check
    _
  $region27: #{audionet_forward.1} parent=0 // pred_check_branch
    %25 = sbr.rel (0) target = $region29
  $region28: #{audionet_forward.1} parent=0 // pred_region
    _
  $region29: #{audionet_forward.1} parent=0 // pred_fallthru
    _
  %v26 = vld [vmem:[%s4] sm:$0xff]
  %v27 = vld [vmem:[%s4 + $0x8] sm:$0xff]
  %v28 = vld [vmem:[%s4 + $0x10] sm:$0xff]
  %v29 = vld [vmem:[%s4 + $0x18] sm:$0xff]
  %v30 = vld [vmem:[%s4 + $0x20] sm:$0xff]
  %v31 = vld [vmem:[%s4 + $0x28] sm:$0xff]
  %v32 = vld [vmem:[%s4 + $0x30] sm:$0xff]
  %v33 = vld [vmem:[%s6 + $0x60] sm:$0x1]
  %v34 = vld [vmem:[%s5] sm:$0xff]
  %v35 = vld [vmem:[%s5 + $0x8] sm:$0xff]
  %v36 = vld [vmem:[%s5 + $0x10] sm:$0xff]
  %v37 = vld [vmem:[%s5 + $0x18] sm:$0xff]
  %v38 = vld [vmem:[%s5 + $0x20] sm:$0xff]
  %v39 = vld [vmem:[%s5 + $0x28] sm:$0xff]
  %v40 = vld [vmem:[%s5 + $0x30] sm:$0xff]
  %v41 = vld [vmem:[%s5 + $0x38] sm:$0xff]
  %v42 = vld [vmem:[%s5 + $0x40] sm:$0xff]
  %v43 = vld [vmem:[%s5 + $0x48] sm:$0xff]
  %v44 = vld [vmem:[%s5 + $0x50] sm:$0xff]
  %v45 = vld [vmem:[%s5 + $0x58] sm:$0xff]
  %v46 = vld [vmem:[%s5 + $0x60] sm:$0xff]
  %v47 = vld [vmem:[%s5 + $0x68] sm:$0xff]
  %v48 = vld [vmem:[%s5 + $0x70] sm:$0xff]
  %v49 = vld [vmem:[%s5 + $0x78] sm:$0xff]
  %v50 = vld [vmem:[%s5 + $0x80] sm:$0xff]
  %v51 = vld [vmem:[%s5 + $0x88] sm:$0xff]
  %v52 = vld [vmem:[%s5 + $0x90] sm:$0xff]
  %v53 = vld [vmem:[%s5 + $0x98] sm:$0xff]
  %v54 = vld [vmem:[%s5 + $0xa0] sm:$0xff]
  %v55 = vld [vmem:[%s5 + $0xa8] sm:$0xff]
  %v56 = vld [vmem:[%s5 + $0xb0] sm:$0xff]
  %v57 = vld [vmem:[%s5 + $0xb8] sm:$0xff]
  %v58 = vld [vmem:[%s5 + $0xc0] sm:$0xff]
  %v59 = vld [vmem:[%s5 + $0xc8] sm:$0xff]
  %v60 = vld [vmem:[%s5 + $0xd0] sm:$0xff]
  %v61 = vld [vmem:[%s5 + $0xd8] sm:$0xff]
  %v62 = vld [vmem:[%s5 + $0xe0] sm:$0xff]
  %v63 = vld [vmem:[%s5 + $0xe8] sm:$0xff]
  %v64 = vld [vmem:[%s5 + $0xf0] sm:$0xff]
  %v65 = vld [vmem:[%s5 + $0xf8] sm:$0xff]
  %v66 = vld [vmem:[%s5 + $0x100] sm:$0xff]
  %v67 = vld [vmem:[%s5 + $0x108] sm:$0xff]
  %v68 = vld [vmem:[%s5 + $0x110] sm:$0xff]
  %v69 = vld [vmem:[%s5 + $0x118] sm:$0xff]
  %v70 = vld [vmem:[%s6 + $0x62] sm:$0x1]
  %v71 = vld [vmem:[%s4 + $0x78] sm:$0xff]
  %v72 = vld [vmem:[%s4 + $0x80] sm:$0xff]
  %v73 = vld [vmem:[%s4 + $0x88] sm:$0xff]
  %v74 = vld [vmem:[%s4 + $0x90] sm:$0xff]
  %v75 = vld [vmem:[%s4 + $0x98] sm:$0xff]
  %v76 = vld [vmem:[%s4 + $0xa0] sm:$0xff]
  %v77 = vld [vmem:[%s4 + $0xa8] sm:$0xff]
  %v78 = vld [vmem:[%s4 + $0xb0] sm:$0xff]
  %v79 = vld [vmem:[%s4 + $0xb8] sm:$0xff]
  %v80 = vld [vmem:[%s4 + $0xc0] sm:$0xff]
  %v81 = vld [vmem:[%s4 + $0xc8] sm:$0xff]
  %v82 = vld [vmem:[%s4 + $0xd0] sm:$0xff]
  %v83 = vld [vmem:[%s4 + $0xd8] sm:$0xff]
  %v84 = vld [vmem:[%s4 + $0xe0] sm:$0xff]
  %v85 = vld [vmem:[%s4 + $0xe8] sm:$0xff]
  %v86 = vld [vmem:[%s4 + $0xf0] sm:$0xff]
  %v87 = vld [vmem:[%s4 + $0xf8] sm:$0xff]
  %v88 = vld [vmem:[%s4 + $0x100] sm:$0xff]
  %v89 = vld [vmem:[%s4 + $0x108] sm:$0xff]
  %v90 = vld [vmem:[%s4 + $0x110] sm:$0xff]
  %v91 = vld [vmem:[%s4 + $0x118] sm:$0xff]
  %v92 = vld [vmem:[%s4 + $0x120] sm:$0xff]
  %v93 = vld [vmem:[%s4 + $0x128] sm:$0xff]
  %v94 = vld [vmem:[%s4 + $0x130] sm:$0xff]
  %v95 = vld [vmem:[%s4 + $0x138] sm:$0xff]
  %v96 = vld [vmem:[%s4 + $0x140] sm:$0xff]
  %v97 = vld [vmem:[%s4 + $0x148] sm:$0xff]
  %v98 = vld [vmem:[%s4 + $0x150] sm:$0xff]
  %v99 = vld [vmem:[%s4 + $0x158] sm:$0xff]
  %v100 = vld [vmem:[%s4 + $0x160] sm:$0xff]
  %v101 = vld [vmem:[%s4 + $0x168] sm:$0xff]
  %v102 = vld [vmem:[%s4 + $0x170] sm:$0xff]
  %v103 = vld [vmem:[%s4 + $0x178] sm:$0xff]
  %v104 = vld [vmem:[%s4 + $0x180] sm:$0xff]
  %v105 = vld [vmem:[%s4 + $0x188] sm:$0xff]
  %v106 = vld [vmem:[%s4 + $0x190] sm:$0xff]
  %v107 = vld [vmem:[%s4 + $0x198] sm:$0xff]
  %v108 = vld [vmem:[%s4 + $0x1a0] sm:$0xff]
  %v109 = vld [vmem:[%s4 + $0x1a8] sm:$0xff]
  %v110 = vld [vmem:[%s4 + $0x1b0] sm:$0xff]
  %v111 = vld [vmem:[%s4 + $0x1b8] sm:$0xff]
  %v112 = vld [vmem:[%s4 + $0x1c0] sm:$0xff]
  %v113 = vld [vmem:[%s4 + $0x1c8] sm:$0xff]
  %v114 = vld [vmem:[%s4 + $0x1d0] sm:$0xff]
  %v115 = vld [vmem:[%s4 + $0x1d8] sm:$0xff]
  %v116 = vld [vmem:[%s4 + $0x1e0] sm:$0xff]
  %v117 = vld [vmem:[%s4 + $0x1e8] sm:$0xff]
  %v118 = vld [vmem:[%s4 + $0x1f0] sm:$0xff]
  %v119 = vld [vmem:[%s4 + $0x1f8] sm:$0xff]
  %v120 = vld [vmem:[%s4 + $0x200] sm:$0xff]
  %v121 = vld [vmem:[%s4 + $0x208] sm:$0xff]
  %v122 = vld [vmem:[%s4 + $0x210] sm:$0xff]
  %v123 = vld [vmem:[%s4 + $0x218] sm:$0xff]
  %v124 = vld [vmem:[%s4 + $0x220] sm:$0xff]
  %v125 = vld [vmem:[%s4 + $0x228] sm:$0xff]
  %v126 = vld [vmem:[%s4 + $0x230] sm:$0xff]
  %v127 = vld [vmem:[%s4 + $0x238] sm:$0xff]
  %v128 = vld [vmem:[%s4 + $0x240] sm:$0xff]
  %v129 = vld [vmem:[%s4 + $0x248] sm:$0xff]
  %v130 = vld [vmem:[%s4 + $0x250] sm:$0xff]
  %v131 = vld [vmem:[%s4 + $0x258] sm:$0xff]
  %v132 = vld [vmem:[%s4 + $0x260] sm:$0xff]
  %v133 = vld [vmem:[%s4 + $0x268] sm:$0xff]
  %v134 = vld [vmem:[%s4 + $0x270] sm:$0xff]
  %v135 = vld [vmem:[%s4 + $0x278] sm:$0xff]
  %v136 = vld [vmem:[%s4 + $0x280] sm:$0xff]
  %v137 = vld [vmem:[%s4 + $0x288] sm:$0xff]
  %v138 = vld [vmem:[%s4 + $0x290] sm:$0xff]
  %v139 = vld [vmem:[%s4 + $0x298] sm:$0xff]
  %v140 = vld [vmem:[%s4 + $0x2a0] sm:$0xff]
  %v141 = vld [vmem:[%s4 + $0x2a8] sm:$0xff]
  %v142 = vld [vmem:[%s4 + $0x2b0] sm:$0xff]
  %v143 = vld [vmem:[%s6 + $0x64] sm:$0x1]
  %v144 = vld [vmem:[%s0] sm:$0xff]
  %v145 = vld [vmem:[%s0 + $0x8] sm:$0xff]
  %v146 = vld [vmem:[%s0 + $0x10] sm:$0xff]
  %v147 = vld [vmem:[%s0 + $0x18] sm:$0xff]
  %v148 = vld [vmem:[%s0 + $0x20] sm:$0xff]
  %v149 = vld [vmem:[%s0 + $0x28] sm:$0xff]
  %v150 = vld [vmem:[%s0 + $0x30] sm:$0xff]
  %v151 = vld [vmem:[%s0 + $0x38] sm:$0xff]
  %v152 = vld [vmem:[%s0 + $0x40] sm:$0xff]
  %v153 = vld [vmem:[%s0 + $0x48] sm:$0xff]
  %v154 = vld [vmem:[%s0 + $0x50] sm:$0xff]
  %v155 = vld [vmem:[%s0 + $0x58] sm:$0xff]
  %v156 = vld [vmem:[%s0 + $0x60] sm:$0xff]
  %v157 = vld [vmem:[%s0 + $0x68] sm:$0xff]
  %v158 = vld [vmem:[%s0 + $0x70] sm:$0xff]
  %v159 = vld [vmem:[%s0 + $0x78] sm:$0xff]
  %v160 = vld [vmem:[%s0 + $0x80] sm:$0xff]
  %v161 = vld [vmem:[%s0 + $0x88] sm:$0xff]
  %v162 = vld [vmem:[%s0 + $0x90] sm:$0xff]
  %v163 = vld [vmem:[%s0 + $0x98] sm:$0xff]
  %v164 = vld [vmem:[%s0 + $0xa0] sm:$0xff]
  %v165 = vld [vmem:[%s0 + $0xa8] sm:$0xff]
  %v166 = vld [vmem:[%s0 + $0xb0] sm:$0xff]
  %v167 = vld [vmem:[%s0 + $0xb8] sm:$0xff]
  %v168 = vld [vmem:[%s0 + $0xc0] sm:$0xff]
  %v169 = vld [vmem:[%s0 + $0xc8] sm:$0xff]
  %v170 = vld [vmem:[%s0 + $0xd0] sm:$0xff]
  %v171 = vlaneseq
  %v172 = vshrl.u32 %v171, 7
  %v173 = vsub.s32 0, %v172
  %v174 = vrot.slane %v33, %v173
  %vm175 = vcmask 457728
  %v177 = vsel %vm175, %v144, 0
  %v180 = vsel %vm175, %v145, 0
  %v183 = vsel %vm175, %v146, 0
  %v186 = vsel %vm175, %v147, 0
  %v189 = vsel %vm175, %v148, 0
  %v192 = vsel %vm175, %v149, 0
  %v195 = vsel %vm175, %v150, 0
  %v198 = vsel %vm175, %v151, 0
  %v201 = vsel %vm175, %v152, 0
  %v204 = vsel %vm175, %v153, 0
  %v207 = vsel %vm175, %v154, 0
  %v210 = vsel %vm175, %v155, 0
  %v213 = vsel %vm175, %v156, 0
  %v216 = vsel %vm175, %v157, 0
  %v219 = vsel %vm175, %v158, 0
  %v222 = vsel %vm175, %v159, 0
  %v225 = vsel %vm175, %v160, 0
  %v228 = vsel %vm175, %v161, 0
  %v231 = vsel %vm175, %v162, 0
  %v234 = vsel %vm175, %v163, 0
  %v237 = vsel %vm175, %v164, 0
  %v240 = vsel %vm175, %v165, 0
  %v243 = vsel %vm175, %v166, 0
  %v246 = vsel %vm175, %v167, 0
  %v249 = vsel %vm175, %v168, 0
  %v252 = vsel %vm175, %v169, 0
  %v255 = vsel %vm175, %v170, 0
  %257 = vmatprep.subr.mxu0 0.0
  %258 = vmatpush1.msra.mxu0 0.0
  %259 = vmatprep.subr.mxu0 0.0
  %260 = vmatpush1.msra.mxu0 0.0
  %261 = vmatprep.subr.mxu0 0.0
  %262 = vmatpush1.msra.mxu0 0.0
  %263 = vmatprep.subr.mxu0 0.0
  %264 = vmatpush1.msra.mxu0 0.0
  %265 = vmatprep.subr.mxu0 0.0
  %266 = vmatpush1.msra.mxu0 0.0
  %267 = vmatprep.subr.mxu0 0.0
  %268 = vmatpush1.msra.mxu0 0.0
  %269 = vmatprep.subr.mxu0 0.0
  %270 = vmatpush1.msra.mxu0 0.0
  %271 = vmatprep.subr.mxu0 0.0
  %272 = vmatpush1.msra.mxu0 0.0
  %273 = vmatprep.subr.mxu0 0.0
  %274 = vmatpush1.msra.mxu0 0.0
  %275 = vmatprep.subr.mxu0 0.0
  %276 = vmatpush1.msra.mxu0 %v32
  %277 = vmatprep.subr.mxu0 0.0
  %278 = vmatpush1.msra.mxu0 %v31
  %279 = vmatprep.subr.mxu0 0.0
  %280 = vmatpush1.msra.mxu0 %v30
  %281 = vmatprep.subr.mxu0 0.0
  %282 = vmatpush1.msra.mxu0 %v29
  %283 = vmatprep.subr.mxu0 0.0
  %284 = vmatpush1.msra.mxu0 %v28
  %285 = vmatprep.subr.mxu0 0.0
  %286 = vmatpush1.msra.mxu0 %v27
  %287 = vmatprep.subr.mxu0 0.0
  %288 = vmatpush1.msra.mxu0 %v26
  %289 = vmatprep.subr.mxu0 0.0
  %290 = vmatpush2.msra.mxu0 0.0
  %291 = vmatprep.subr.mxu0 0.0
  %292 = vmatpush2.msra.mxu0 0.0
  %293 = vmatprep.subr.mxu0 0.0
  %294 = vmatpush2.msra.mxu0 0.0
  %295 = vmatprep.subr.mxu0 0.0
  %296 = vmatpush2.msra.mxu0 0.0
  %297 = vmatprep.subr.mxu0 0.0
  %298 = vmatpush2.msra.mxu0 0.0
  %299 = vmatprep.subr.mxu0 0.0
  %300 = vmatpush2.msra.mxu0 0.0
  %301 = vmatprep.subr.mxu0 0.0
  %302 = vmatpush2.msra.mxu0 0.0
  %303 = vmatprep.subr.mxu0 0.0
  %304 = vmatpush2.msra.mxu0 0.0
  %305 = vmatprep.subr.mxu0 0.0
  %306 = vmatpush2.msra.mxu0 0.0
  %307 = vmatprep.subr.mxu0 0.0
  %308 = vmatpush2.msra.mxu0 0.0
  %309 = vmatprep.subr.mxu0 0.0
  %310 = vmatpush2.msra.mxu0 0.0
  %311 = vmatprep.subr.mxu0 0.0
  %312 = vmatpush2.msra.mxu0 0.0
  %313 = vmatprep.subr.mxu0 0.0
  %314 = vmatpush2.msra.mxu0 0.0
  %315 = vmatprep.subr.mxu0 0.0
  %316 = vmatpush2.msra.mxu0 0.0
  %317 = vmatprep.subr.mxu0 0.0
  %318 = vmatpush2.msra.mxu0 0.0
  %319 = vmatprep.subr.mxu0 0.0
  %320 = vmatpush2.msra.mxu0 0.0
  %321 = vmatprep.mubr.f32.mxu0 0.0
  %322 = vmatmul.mubr.f32.gmra.mxu0 %v177
  %v323 = vpop.f32.mrf.mxu0
  %v324 = vadd.f32 %v174, %v323
  %v325 = vpop.f32.mrf.mxu0
  %326 = vmatprep.mubr.f32.mxu0 0.0
  %327 = vmatmul.mubr.f32.gmra.mxu0 %v180
  %v328 = vpop.f32.mrf.mxu0
  %v329 = vadd.f32 %v174, %v328
  %v330 = vpop.f32.mrf.mxu0
  %331 = vmatprep.mubr.f32.mxu0 0.0
  %332 = vmatmul.mubr.f32.gmra.mxu0 %v183
  %v333 = vpop.f32.mrf.mxu0
  %v334 = vadd.f32 %v174, %v333
  %v335 = vpop.f32.mrf.mxu0
  %336 = vmatprep.mubr.f32.mxu0 0.0
  %337 = vmatmul.mubr.f32.gmra.mxu0 %v186
  %v338 = vpop.f32.mrf.mxu0
  %v339 = vadd.f32 %v174, %v338
  %v340 = vpop.f32.mrf.mxu0
  %341 = vmatprep.mubr.f32.mxu0 0.0
  %342 = vmatmul.mubr.f32.gmra.mxu0 %v189
  %v343 = vpop.f32.mrf.mxu0
  %v344 = vadd.f32 %v174, %v343
  %v345 = vpop.f32.mrf.mxu0
  %346 = vmatprep.mubr.f32.mxu0 0.0
  %347 = vmatmul.mubr.f32.gmra.mxu0 %v192
  %v348 = vpop.f32.mrf.mxu0
  %v349 = vadd.f32 %v174, %v348
  %v350 = vpop.f32.mrf.mxu0
  %351 = vmatprep.mubr.f32.mxu0 0.0
  %352 = vmatmul.mubr.f32.gmra.mxu0 %v195
  %v353 = vpop.f32.mrf.mxu0
  %v354 = vadd.f32 %v174, %v353
  %v355 = vpop.f32.mrf.mxu0
  %356 = vmatprep.mubr.f32.mxu0 0.0
  %357 = vmatmul.mubr.f32.gmra.mxu0 %v198
  %v358 = vpop.f32.mrf.mxu0
  %v359 = vadd.f32 %v174, %v358
  %v360 = vpop.f32.mrf.mxu0
  %361 = vmatprep.mubr.f32.mxu0 0.0
  %362 = vmatmul.mubr.f32.gmra.mxu0 %v201
  %v363 = vpop.f32.mrf.mxu0
  %v364 = vadd.f32 %v174, %v363
  %v365 = vpop.f32.mrf.mxu0
  %366 = vmatprep.mubr.f32.mxu0 0.0
  %367 = vmatmul.mubr.f32.gmra.mxu0 %v204
  %v368 = vpop.f32.mrf.mxu0
  %v369 = vadd.f32 %v174, %v368
  %v370 = vpop.f32.mrf.mxu0
  %371 = vmatprep.mubr.f32.mxu0 0.0
  %372 = vmatmul.mubr.f32.gmra.mxu0 %v207
  %v373 = vpop.f32.mrf.mxu0
  %v374 = vadd.f32 %v174, %v373
  %v375 = vpop.f32.mrf.mxu0
  %376 = vmatprep.mubr.f32.mxu0 0.0
  %377 = vmatmul.mubr.f32.gmra.mxu0 %v210
  %v378 = vpop.f32.mrf.mxu0
  %v379 = vadd.f32 %v174, %v378
  %v380 = vpop.f32.mrf.mxu0
  %381 = vmatprep.mubr.f32.mxu0 0.0
  %382 = vmatmul.mubr.f32.gmra.mxu0 %v213
  %v383 = vpop.f32.mrf.mxu0
  %v384 = vadd.f32 %v174, %v383
  %v385 = vpop.f32.mrf.mxu0
  %386 = vmatprep.mubr.f32.mxu0 0.0
  %387 = vmatmul.mubr.f32.gmra.mxu0 %v216
  %v388 = vpop.f32.mrf.mxu0
  %v389 = vadd.f32 %v174, %v388
  %v390 = vpop.f32.mrf.mxu0
  %391 = vmatprep.mubr.f32.mxu0 0.0
  %392 = vmatmul.mubr.f32.gmra.mxu0 %v219
  %v393 = vpop.f32.mrf.mxu0
  %v394 = vadd.f32 %v174, %v393
  %v395 = vpop.f32.mrf.mxu0
  %396 = vmatprep.mubr.f32.mxu0 0.0
  %397 = vmatmul.mubr.f32.gmra.mxu0 %v222
  %v398 = vpop.f32.mrf.mxu0
  %v399 = vadd.f32 %v174, %v398
  %v400 = vpop.f32.mrf.mxu0
  %401 = vmatprep.mubr.f32.mxu0 0.0
  %402 = vmatmul.mubr.f32.gmra.mxu0 %v225
  %v403 = vpop.f32.mrf.mxu0
  %v404 = vadd.f32 %v174, %v403
  %v405 = vpop.f32.mrf.mxu0
  %406 = vmatprep.mubr.f32.mxu0 0.0
  %407 = vmatmul.mubr.f32.gmra.mxu0 %v228
  %v408 = vpop.f32.mrf.mxu0
  %v409 = vadd.f32 %v174, %v408
  %v410 = vpop.f32.mrf.mxu0
  %411 = vmatprep.mubr.f32.mxu0 0.0
  %412 = vmatmul.mubr.f32.gmra.mxu0 %v231
  %v413 = vpop.f32.mrf.mxu0
  %v414 = vadd.f32 %v174, %v413
  %v415 = vpop.f32.mrf.mxu0
  %416 = vmatprep.mubr.f32.mxu0 0.0
  %417 = vmatmul.mubr.f32.gmra.mxu0 %v234
  %v418 = vpop.f32.mrf.mxu0
  %v419 = vadd.f32 %v174, %v418
  %v420 = vpop.f32.mrf.mxu0
  %421 = vmatprep.mubr.f32.mxu0 0.0
  %422 = vmatmul.mubr.f32.gmra.mxu0 %v237
  %v423 = vpop.f32.mrf.mxu0
  %v424 = vadd.f32 %v174, %v423
  %v425 = vpop.f32.mrf.mxu0
  %426 = vmatprep.mubr.f32.mxu0 0.0
  %427 = vmatmul.mubr.f32.gmra.mxu0 %v240
  %v428 = vpop.f32.mrf.mxu0
  %v429 = vadd.f32 %v174, %v428
  %v430 = vpop.f32.mrf.mxu0
  %431 = vmatprep.mubr.f32.mxu0 0.0
  %432 = vmatmul.mubr.f32.gmra.mxu0 %v243
  %v433 = vpop.f32.mrf.mxu0
  %v434 = vadd.f32 %v174, %v433
  %v435 = vpop.f32.mrf.mxu0
  %436 = vmatprep.mubr.f32.mxu0 0.0
  %437 = vmatmul.mubr.f32.gmra.mxu0 %v246
  %v438 = vpop.f32.mrf.mxu0
  %v439 = vadd.f32 %v174, %v438
  %v440 = vpop.f32.mrf.mxu0
  %441 = vmatprep.mubr.f32.mxu0 0.0
  %442 = vmatmul.mubr.f32.gmra.mxu0 %v249
  %v443 = vpop.f32.mrf.mxu0
  %v444 = vadd.f32 %v174, %v443
  %v445 = vpop.f32.mrf.mxu0
  %446 = vmatprep.mubr.f32.mxu0 0.0
  %447 = vmatmul.mubr.f32.gmra.mxu0 %v252
  %v448 = vpop.f32.mrf.mxu0
  %v449 = vadd.f32 %v174, %v448
  %v450 = vpop.f32.mrf.mxu0
  %451 = vmatprep.mubr.f32.mxu0 0.0
  %452 = vmatmul.mubr.f32.gmra.mxu0 %v255
  %v453 = vpop.f32.mrf.mxu0
  %v454 = vadd.f32 %v174, %v453
  %v455 = vpop.f32.mrf.mxu0
  %456 = vdwg.mxu0
  %v457 = vmax.f32 %v324, 0.0
  %v458 = vmax.f32 %v329, 0.0
  %v459 = vmax.f32 %v334, 0.0
  %v460 = vmax.f32 %v339, 0.0
  %v461 = vmax.f32 %v344, 0.0
  %v462 = vmax.f32 %v349, 0.0
  %v463 = vmax.f32 %v354, 0.0
  %v464 = vmax.f32 %v359, 0.0
  %v465 = vmax.f32 %v364, 0.0
  %v466 = vmax.f32 %v369, 0.0
  %v467 = vmax.f32 %v374, 0.0
  %v468 = vmax.f32 %v379, 0.0
  %v469 = vmax.f32 %v384, 0.0
  %v470 = vmax.f32 %v389, 0.0
  %v471 = vmax.f32 %v394, 0.0
  %v472 = vmax.f32 %v399, 0.0
  %v473 = vmax.f32 %v404, 0.0
  %v474 = vmax.f32 %v409, 0.0
  %v475 = vmax.f32 %v414, 0.0
  %v476 = vmax.f32 %v419, 0.0
  %v477 = vmax.f32 %v424, 0.0
  %v478 = vmax.f32 %v429, 0.0
  %v479 = vmax.f32 %v434, 0.0
  %v480 = vmax.f32 %v439, 0.0
  %v481 = vmax.f32 %v444, 0.0
  %v482 = vmax.f32 %v449, 0.0
  %v483 = vmax.f32 %v454, 0.0
  %487 = vrot.lane.b32.xlu0 %v460, 32
  %v488 = vpop.permute.xlu0 %487
  %489 = vrot.lane.b32.xlu0 %v461, 32
  %v490 = vpop.permute.xlu0 %489
  %491 = vrot.lane.b32.xlu0 %v462, 32
  %v492 = vpop.permute.xlu0 %491
  %499 = vrot.lane.b32.xlu0 %v463, 64
  %v500 = vpop.permute.xlu0 %499
  %501 = vrot.lane.b32.xlu0 %v464, 64
  %v502 = vpop.permute.xlu0 %501
  %503 = vrot.lane.b32.xlu0 %v465, 64
  %v504 = vpop.permute.xlu0 %503
  %511 = vrot.lane.b32.xlu0 %v466, 96
  %v512 = vpop.permute.xlu0 %511
  %513 = vrot.lane.b32.xlu0 %v467, 96
  %v514 = vpop.permute.xlu0 %513
  %515 = vrot.lane.b32.xlu0 %v468, 96
  %v516 = vpop.permute.xlu0 %515
  %523 = vrot.lane.b32.xlu0 %v472, 32
  %v524 = vpop.permute.xlu0 %523
  %525 = vrot.lane.b32.xlu0 %v473, 32
  %v526 = vpop.permute.xlu0 %525
  %527 = vrot.lane.b32.xlu0 %v474, 32
  %v528 = vpop.permute.xlu0 %527
  %535 = vrot.lane.b32.xlu0 %v475, 64
  %v536 = vpop.permute.xlu0 %535
  %537 = vrot.lane.b32.xlu0 %v476, 64
  %v538 = vpop.permute.xlu0 %537
  %539 = vrot.lane.b32.xlu0 %v477, 64
  %v540 = vpop.permute.xlu0 %539
  %547 = vrot.lane.b32.xlu0 %v478, 96
  %v548 = vpop.permute.xlu0 %547
  %549 = vrot.lane.b32.xlu0 %v479, 96
  %v550 = vpop.permute.xlu0 %549
  %551 = vrot.lane.b32.xlu0 %v480, 96
  %v552 = vpop.permute.xlu0 %551
  %vm556 = vcmask 261120
  %v557 = vsel %vm556, %v457, %v488
  %v558 = vsel %vm556, %v458, %v490
  %v559 = vsel %vm556, %v459, %v492
  %vm560 = vcmask 523264
  %v561 = vsel %vm560, %v557, %v500
  %v562 = vsel %vm560, %v558, %v502
  %v563 = vsel %vm560, %v559, %v504
  %vm564 = vcmask 785408
  %v565 = vsel %vm564, %v561, %v512
  %v566 = vsel %vm564, %v562, %v514
  %v567 = vsel %vm564, %v563, %v516
  %v568 = vsel %vm556, %v469, %v524
  %v569 = vsel %vm556, %v470, %v526
  %v570 = vsel %vm556, %v471, %v528
  %v571 = vsel %vm560, %v568, %v536
  %v572 = vsel %vm560, %v569, %v538
  %v573 = vsel %vm560, %v570, %v540
  %v574 = vsel %vm564, %v571, %v548
  %v575 = vsel %vm564, %v572, %v550
  %v576 = vsel %vm564, %v573, %v552
  %v577 = vlaneseq
  %v578 = vshrl.u32 %v577, 7
  %v579 = vsub.s32 0, %v578
  %v580 = vrot.slane %v70, %v579
  %v582 = vsel %vm556, %v481, 0
  %v585 = vsel %vm556, %v482, 0
  %v588 = vsel %vm556, %v483, 0
  %590 = vmatprep.subr.mxu0 0.0
  %591 = vmatpush1.msra.mxu0 %v49
  %592 = vmatprep.subr.mxu0 0.0
  %593 = vmatpush1.msra.mxu0 %v48
  %594 = vmatprep.subr.mxu0 0.0
  %595 = vmatpush1.msra.mxu0 %v47
  %596 = vmatprep.subr.mxu0 0.0
  %597 = vmatpush1.msra.mxu0 %v46
  %598 = vmatprep.subr.mxu0 0.0
  %599 = vmatpush1.msra.mxu0 %v45
  %600 = vmatprep.subr.mxu0 0.0
  %601 = vmatpush1.msra.mxu0 %v44
  %602 = vmatprep.subr.mxu0 0.0
  %603 = vmatpush1.msra.mxu0 %v43
  %604 = vmatprep.subr.mxu0 0.0
  %605 = vmatpush1.msra.mxu0 %v42
  %606 = vmatprep.subr.mxu0 0.0
  %607 = vmatpush1.msra.mxu0 %v41
  %608 = vmatprep.subr.mxu0 0.0
  %609 = vmatpush1.msra.mxu0 %v40
  %610 = vmatprep.subr.mxu0 0.0
  %611 = vmatpush1.msra.mxu0 %v39
  %612 = vmatprep.subr.mxu0 0.0
  %613 = vmatpush1.msra.mxu0 %v38
  %614 = vmatprep.subr.mxu0 0.0
  %615 = vmatpush1.msra.mxu0 %v37
  %616 = vmatprep.subr.mxu0 0.0
  %617 = vmatpush1.msra.mxu0 %v36
  %618 = vmatprep.subr.mxu0 0.0
  %619 = vmatpush1.msra.mxu0 %v35
  %620 = vmatprep.subr.mxu0 0.0
  %621 = vmatpush1.msra.mxu0 %v34
  %622 = vmatprep.subr.mxu0 0.0
  %623 = vmatpush2.msra.mxu0 %v65
  %624 = vmatprep.subr.mxu0 0.0
  %625 = vmatpush2.msra.mxu0 %v64
  %626 = vmatprep.subr.mxu0 0.0
  %627 = vmatpush2.msra.mxu0 %v63
  %628 = vmatprep.subr.mxu0 0.0
  %629 = vmatpush2.msra.mxu0 %v62
  %630 = vmatprep.subr.mxu0 0.0
  %631 = vmatpush2.msra.mxu0 %v61
  %632 = vmatprep.subr.mxu0 0.0
  %633 = vmatpush2.msra.mxu0 %v60
  %634 = vmatprep.subr.mxu0 0.0
  %635 = vmatpush2.msra.mxu0 %v59
  %636 = vmatprep.subr.mxu0 0.0
  %637 = vmatpush2.msra.mxu0 %v58
  %638 = vmatprep.subr.mxu0 0.0
  %639 = vmatpush2.msra.mxu0 %v57
  %640 = vmatprep.subr.mxu0 0.0
  %641 = vmatpush2.msra.mxu0 %v56
  %642 = vmatprep.subr.mxu0 0.0
  %643 = vmatpush2.msra.mxu0 %v55
  %644 = vmatprep.subr.mxu0 0.0
  %645 = vmatpush2.msra.mxu0 %v54
  %646 = vmatprep.subr.mxu0 0.0
  %647 = vmatpush2.msra.mxu0 %v53
  %648 = vmatprep.subr.mxu0 0.0
  %649 = vmatpush2.msra.mxu0 %v52
  %650 = vmatprep.subr.mxu0 0.0
  %651 = vmatpush2.msra.mxu0 %v51
  %652 = vmatprep.subr.mxu0 0.0
  %653 = vmatpush2.msra.mxu0 %v50
  %654 = vmatprep.mubr.f32.mxu0 %v574
  %655 = vmatmul.mubr.f32.gmra.mxu0 %v565
  %v656 = vpop.f32.mrf.mxu0
  %v657 = vadd.f32 %v580, %v656
  %v658 = vpop.f32.mrf.mxu0
  %659 = vmatprep.mubr.f32.mxu0 %v575
  %660 = vmatmul.mubr.f32.gmra.mxu0 %v566
  %v661 = vpop.f32.mrf.mxu0
  %v662 = vadd.f32 %v580, %v661
  %v663 = vpop.f32.mrf.mxu0
  %664 = vmatprep.mubr.f32.mxu0 %v576
  %665 = vmatmul.mubr.f32.gmra.mxu0 %v567
  %v666 = vpop.f32.mrf.mxu0
  %v667 = vadd.f32 %v580, %v666
  %v668 = vpop.f32.mrf.mxu0
  %669 = vdwg.mxu0
  %670 = vmatprep.subr.mxu0 0.0
  %671 = vmatpush1.msra.mxu0 0.0
  %672 = vmatprep.subr.mxu0 0.0
  %673 = vmatpush1.msra.mxu0 0.0
  %674 = vmatprep.subr.mxu0 0.0
  %675 = vmatpush1.msra.mxu0 0.0
  %676 = vmatprep.subr.mxu0 0.0
  %677 = vmatpush1.msra.mxu0 0.0
  %678 = vmatprep.subr.mxu0 0.0
  %679 = vmatpush1.msra.mxu0 0.0
  %680 = vmatprep.subr.mxu0 0.0
  %681 = vmatpush1.msra.mxu0 0.0
  %682 = vmatprep.subr.mxu0 0.0
  %683 = vmatpush1.msra.mxu0 0.0
  %684 = vmatprep.subr.mxu0 0.0
  %685 = vmatpush1.msra.mxu0 0.0
  %686 = vmatprep.subr.mxu0 0.0
  %687 = vmatpush1.msra.mxu0 0.0
  %688 = vmatprep.subr.mxu0 0.0
  %689 = vmatpush1.msra.mxu0 0.0
  %690 = vmatprep.subr.mxu0 0.0
  %691 = vmatpush1.msra.mxu0 0.0
  %692 = vmatprep.subr.mxu0 0.0
  %693 = vmatpush1.msra.mxu0 0.0
  %694 = vmatprep.subr.mxu0 0.0
  %695 = vmatpush1.msra.mxu0 %v69
  %696 = vmatprep.subr.mxu0 0.0
  %697 = vmatpush1.msra.mxu0 %v68
  %698 = vmatprep.subr.mxu0 0.0
  %699 = vmatpush1.msra.mxu0 %v67
  %700 = vmatprep.subr.mxu0 0.0
  %701 = vmatpush1.msra.mxu0 %v66
  %702 = vmatprep.subr.mxu0 0.0
  %703 = vmatpush2.msra.mxu0 0.0
  %704 = vmatprep.subr.mxu0 0.0
  %705 = vmatpush2.msra.mxu0 0.0
  %706 = vmatprep.subr.mxu0 0.0
  %707 = vmatpush2.msra.mxu0 0.0
  %708 = vmatprep.subr.mxu0 0.0
  %709 = vmatpush2.msra.mxu0 0.0
  %710 = vmatprep.subr.mxu0 0.0
  %711 = vmatpush2.msra.mxu0 0.0
  %712 = vmatprep.subr.mxu0 0.0
  %713 = vmatpush2.msra.mxu0 0.0
  %714 = vmatprep.subr.mxu0 0.0
  %715 = vmatpush2.msra.mxu0 0.0
  %716 = vmatprep.subr.mxu0 0.0
  %717 = vmatpush2.msra.mxu0 0.0
  %718 = vmatprep.subr.mxu0 0.0
  %719 = vmatpush2.msra.mxu0 0.0
  %720 = vmatprep.subr.mxu0 0.0
  %721 = vmatpush2.msra.mxu0 0.0
  %722 = vmatprep.subr.mxu0 0.0
  %723 = vmatpush2.msra.mxu0 0.0
  %724 = vmatprep.subr.mxu0 0.0
  %725 = vmatpush2.msra.mxu0 0.0
  %726 = vmatprep.subr.mxu0 0.0
  %727 = vmatpush2.msra.mxu0 0.0
  %728 = vmatprep.subr.mxu0 0.0
  %729 = vmatpush2.msra.mxu0 0.0
  %730 = vmatprep.subr.mxu0 0.0
  %731 = vmatpush2.msra.mxu0 0.0
  %732 = vmatprep.subr.mxu0 0.0
  %733 = vmatpush2.msra.mxu0 0.0
  %734 = vmatprep.mubr.f32.mxu0 0.0
  %735 = vmatmul.mubr.f32.gmra.mxu0 %v582
  %v736 = vpop.f32.mrf.mxu0
  %v737 = vadd.f32 %v657, %v736
  %v738 = vpop.f32.mrf.mxu0
  %739 = vmatprep.mubr.f32.mxu0 0.0
  %740 = vmatmul.mubr.f32.gmra.mxu0 %v585
  %v741 = vpop.f32.mrf.mxu0
  %v742 = vadd.f32 %v662, %v741
  %v743 = vpop.f32.mrf.mxu0
  %744 = vmatprep.mubr.f32.mxu0 0.0
  %745 = vmatmul.mubr.f32.gmra.mxu0 %v588
  %v746 = vpop.f32.mrf.mxu0
  %v747 = vadd.f32 %v667, %v746
  %v748 = vpop.f32.mrf.mxu0
  %749 = vdwg.mxu0
  %v750 = vmax.f32 %v737, 0.0
  %v751 = vmax.f32 %v742, 0.0
  %v752 = vmax.f32 %v747, 0.0
  %v754 = vrot.slane %v750, 2
  %755 = vrot.lane.b32.xlu0 %v754, 64
  %v756 = vpop.permute.xlu0 %755
  %v758 = vrot.slane %v750, 4
  %v760 = vrot.slane %v750, 6
  %761 = vrot.lane.b32.xlu0 %v760, 64
  %v762 = vpop.permute.xlu0 %761
  %v765 = vrot.slane %v751, 2
  %766 = vrot.lane.b32.xlu0 %v765, 64
  %v767 = vpop.permute.xlu0 %766
  %v769 = vrot.slane %v751, 4
  %v771 = vrot.slane %v751, 6
  %772 = vrot.lane.b32.xlu0 %v771, 64
  %v773 = vpop.permute.xlu0 %772
  %v775 = vsel %vm560, %v750, %v756
  %v776 = vsel %vm560, %v758, %v762
  %v777 = vsel %vm560, %v751, %v767
  %v778 = vsel %vm560, %v769, %v773
  %v779 = vlaneseq
  %v780 = vshrl.u32 %v779, 7
  %v781 = vsub.s32 0, %v780
  %v782 = vrot.slane %v143, %v781
  %v784 = vsel %vm560, %v752, 0
  %786 = vmatprep.subr.mxu0 0.0
  %787 = vmatpush1.msra.mxu0 %v86
  %788 = vmatprep.subr.mxu0 0.0
  %789 = vmatpush1.msra.mxu0 %v85
  %790 = vmatprep.subr.mxu0 0.0
  %791 = vmatpush1.msra.mxu0 %v84
  %792 = vmatprep.subr.mxu0 0.0
  %793 = vmatpush1.msra.mxu0 %v83
  %794 = vmatprep.subr.mxu0 0.0
  %795 = vmatpush1.msra.mxu0 %v82
  %796 = vmatprep.subr.mxu0 0.0
  %797 = vmatpush1.msra.mxu0 %v81
  %798 = vmatprep.subr.mxu0 0.0
  %799 = vmatpush1.msra.mxu0 %v80
  %800 = vmatprep.subr.mxu0 0.0
  %801 = vmatpush1.msra.mxu0 %v79
  %802 = vmatprep.subr.mxu0 0.0
  %803 = vmatpush1.msra.mxu0 %v78
  %804 = vmatprep.subr.mxu0 0.0
  %805 = vmatpush1.msra.mxu0 %v77
  %806 = vmatprep.subr.mxu0 0.0
  %807 = vmatpush1.msra.mxu0 %v76
  %808 = vmatprep.subr.mxu0 0.0
  %809 = vmatpush1.msra.mxu0 %v75
  %810 = vmatprep.subr.mxu0 0.0
  %811 = vmatpush1.msra.mxu0 %v74
  %812 = vmatprep.subr.mxu0 0.0
  %813 = vmatpush1.msra.mxu0 %v73
  %814 = vmatprep.subr.mxu0 0.0
  %815 = vmatpush1.msra.mxu0 %v72
  %816 = vmatprep.subr.mxu0 0.0
  %817 = vmatpush1.msra.mxu0 %v71
  %818 = vmatprep.subr.mxu0 0.0
  %819 = vmatpush2.msra.mxu0 %v102
  %820 = vmatprep.subr.mxu0 0.0
  %821 = vmatpush2.msra.mxu0 %v101
  %822 = vmatprep.subr.mxu0 0.0
  %823 = vmatpush2.msra.mxu0 %v100
  %824 = vmatprep.subr.mxu0 0.0
  %825 = vmatpush2.msra.mxu0 %v99
  %826 = vmatprep.subr.mxu0 0.0
  %827 = vmatpush2.msra.mxu0 %v98
  %828 = vmatprep.subr.mxu0 0.0
  %829 = vmatpush2.msra.mxu0 %v97
  %830 = vmatprep.subr.mxu0 0.0
  %831 = vmatpush2.msra.mxu0 %v96
  %832 = vmatprep.subr.mxu0 0.0
  %833 = vmatpush2.msra.mxu0 %v95
  %834 = vmatprep.subr.mxu0 0.0
  %835 = vmatpush2.msra.mxu0 %v94
  %836 = vmatprep.subr.mxu0 0.0
  %837 = vmatpush2.msra.mxu0 %v93
  %838 = vmatprep.subr.mxu0 0.0
  %839 = vmatpush2.msra.mxu0 %v92
  %840 = vmatprep.subr.mxu0 0.0
  %841 = vmatpush2.msra.mxu0 %v91
  %842 = vmatprep.subr.mxu0 0.0
  %843 = vmatpush2.msra.mxu0 %v90
  %844 = vmatprep.subr.mxu0 0.0
  %845 = vmatpush2.msra.mxu0 %v89
  %846 = vmatprep.subr.mxu0 0.0
  %847 = vmatpush2.msra.mxu0 %v88
  %848 = vmatprep.subr.mxu0 0.0
  %849 = vmatpush2.msra.mxu0 %v87
  %850 = vmatprep.mubr.f32.mxu0 %v776
  %851 = vmatmul.mubr.f32.gmra.mxu0 %v775
  %v852 = vpop.f32.mrf.mxu0
  %v853 = vadd.f32 %v782, %v852
  %v854 = vpop.f32.mrf.mxu0
  %855 = vdwg.mxu0
  %856 = vmatprep.subr.mxu0 0.0
  %857 = vmatpush1.msra.mxu0 %v118
  %858 = vmatprep.subr.mxu0 0.0
  %859 = vmatpush1.msra.mxu0 %v117
  %860 = vmatprep.subr.mxu0 0.0
  %861 = vmatpush1.msra.mxu0 %v116
  %862 = vmatprep.subr.mxu0 0.0
  %863 = vmatpush1.msra.mxu0 %v115
  %864 = vmatprep.subr.mxu0 0.0
  %865 = vmatpush1.msra.mxu0 %v114
  %866 = vmatprep.subr.mxu0 0.0
  %867 = vmatpush1.msra.mxu0 %v113
  %868 = vmatprep.subr.mxu0 0.0
  %869 = vmatpush1.msra.mxu0 %v112
  %870 = vmatprep.subr.mxu0 0.0
  %871 = vmatpush1.msra.mxu0 %v111
  %872 = vmatprep.subr.mxu0 0.0
  %873 = vmatpush1.msra.mxu0 %v110
  %874 = vmatprep.subr.mxu0 0.0
  %875 = vmatpush1.msra.mxu0 %v109
  %876 = vmatprep.subr.mxu0 0.0
  %877 = vmatpush1.msra.mxu0 %v108
  %878 = vmatprep.subr.mxu0 0.0
  %879 = vmatpush1.msra.mxu0 %v107
  %880 = vmatprep.subr.mxu0 0.0
  %881 = vmatpush1.msra.mxu0 %v106
  %882 = vmatprep.subr.mxu0 0.0
  %883 = vmatpush1.msra.mxu0 %v105
  %884 = vmatprep.subr.mxu0 0.0
  %885 = vmatpush1.msra.mxu0 %v104
  %886 = vmatprep.subr.mxu0 0.0
  %887 = vmatpush1.msra.mxu0 %v103
  %888 = vmatprep.subr.mxu0 0.0
  %889 = vmatpush2.msra.mxu0 %v134
  %890 = vmatprep.subr.mxu0 0.0
  %891 = vmatpush2.msra.mxu0 %v133
  %892 = vmatprep.subr.mxu0 0.0
  %893 = vmatpush2.msra.mxu0 %v132
  %894 = vmatprep.subr.mxu0 0.0
  %895 = vmatpush2.msra.mxu0 %v131
  %896 = vmatprep.subr.mxu0 0.0
  %897 = vmatpush2.msra.mxu0 %v130
  %898 = vmatprep.subr.mxu0 0.0
  %899 = vmatpush2.msra.mxu0 %v129
  %900 = vmatprep.subr.mxu0 0.0
  %901 = vmatpush2.msra.mxu0 %v128
  %902 = vmatprep.subr.mxu0 0.0
  %903 = vmatpush2.msra.mxu0 %v127
  %904 = vmatprep.subr.mxu0 0.0
  %905 = vmatpush2.msra.mxu0 %v126
  %906 = vmatprep.subr.mxu0 0.0
  %907 = vmatpush2.msra.mxu0 %v125
  %908 = vmatprep.subr.mxu0 0.0
  %909 = vmatpush2.msra.mxu0 %v124
  %910 = vmatprep.subr.mxu0 0.0
  %911 = vmatpush2.msra.mxu0 %v123
  %912 = vmatprep.subr.mxu0 0.0
  %913 = vmatpush2.msra.mxu0 %v122
  %914 = vmatprep.subr.mxu0 0.0
  %915 = vmatpush2.msra.mxu0 %v121
  %916 = vmatprep.subr.mxu0 0.0
  %917 = vmatpush2.msra.mxu0 %v120
  %918 = vmatprep.subr.mxu0 0.0
  %919 = vmatpush2.msra.mxu0 %v119
  %920 = vmatprep.mubr.f32.mxu0 %v778
  %921 = vmatmul.mubr.f32.gmra.mxu0 %v777
  %v922 = vpop.f32.mrf.mxu0
  %v923 = vadd.f32 %v853, %v922
  %v924 = vpop.f32.mrf.mxu0
  %925 = vdwg.mxu0
  %926 = vmatprep.subr.mxu0 0.0
  %927 = vmatpush1.msra.mxu0 0.0
  %928 = vmatprep.subr.mxu0 0.0
  %929 = vmatpush1.msra.mxu0 0.0
  %930 = vmatprep.subr.mxu0 0.0
  %931 = vmatpush1.msra.mxu0 0.0
  %932 = vmatprep.subr.mxu0 0.0
  %933 = vmatpush1.msra.mxu0 0.0
  %934 = vmatprep.subr.mxu0 0.0
  %935 = vmatpush1.msra.mxu0 0.0
  %936 = vmatprep.subr.mxu0 0.0
  %937 = vmatpush1.msra.mxu0 0.0
  %938 = vmatprep.subr.mxu0 0.0
  %939 = vmatpush1.msra.mxu0 0.0
  %940 = vmatprep.subr.mxu0 0.0
  %941 = vmatpush1.msra.mxu0 0.0
  %942 = vmatprep.subr.mxu0 0.0
  %943 = vmatpush1.msra.mxu0 %v142
  %944 = vmatprep.subr.mxu0 0.0
  %945 = vmatpush1.msra.mxu0 %v141
  %946 = vmatprep.subr.mxu0 0.0
  %947 = vmatpush1.msra.mxu0 %v140
  %948 = vmatprep.subr.mxu0 0.0
  %949 = vmatpush1.msra.mxu0 %v139
  %950 = vmatprep.subr.mxu0 0.0
  %951 = vmatpush1.msra.mxu0 %v138
  %952 = vmatprep.subr.mxu0 0.0
  %953 = vmatpush1.msra.mxu0 %v137
  %954 = vmatprep.subr.mxu0 0.0
  %955 = vmatpush1.msra.mxu0 %v136
  %956 = vmatprep.subr.mxu0 0.0
  %957 = vmatpush1.msra.mxu0 %v135
  %958 = vmatprep.subr.mxu0 0.0
  %959 = vmatpush2.msra.mxu0 0.0
  %960 = vmatprep.subr.mxu0 0.0
  %961 = vmatpush2.msra.mxu0 0.0
  %962 = vmatprep.subr.mxu0 0.0
  %963 = vmatpush2.msra.mxu0 0.0
  %964 = vmatprep.subr.mxu0 0.0
  %965 = vmatpush2.msra.mxu0 0.0
  %966 = vmatprep.subr.mxu0 0.0
  %967 = vmatpush2.msra.mxu0 0.0
  %968 = vmatprep.subr.mxu0 0.0
  %969 = vmatpush2.msra.mxu0 0.0
  %970 = vmatprep.subr.mxu0 0.0
  %971 = vmatpush2.msra.mxu0 0.0
  %972 = vmatprep.subr.mxu0 0.0
  %973 = vmatpush2.msra.mxu0 0.0
  %974 = vmatprep.subr.mxu0 0.0
  %975 = vmatpush2.msra.mxu0 0.0
  %976 = vmatprep.subr.mxu0 0.0
  %977 = vmatpush2.msra.mxu0 0.0
  %978 = vmatprep.subr.mxu0 0.0
  %979 = vmatpush2.msra.mxu0 0.0
  %980 = vmatprep.subr.mxu0 0.0
  %981 = vmatpush2.msra.mxu0 0.0
  %982 = vmatprep.subr.mxu0 0.0
  %983 = vmatpush2.msra.mxu0 0.0
  %984 = vmatprep.subr.mxu0 0.0
  %985 = vmatpush2.msra.mxu0 0.0
  %986 = vmatprep.subr.mxu0 0.0
  %987 = vmatpush2.msra.mxu0 0.0
  %988 = vmatprep.subr.mxu0 0.0
  %989 = vmatpush2.msra.mxu0 0.0
  %990 = vmatprep.mubr.f32.mxu0 0.0
  %991 = vmatmul.mubr.f32.gmra.mxu0 %v784
  %v992 = vpop.f32.mrf.mxu0
  %v993 = vadd.f32 %v923, %v992
  %v994 = vpop.f32.mrf.mxu0
  %995 = vdwg.mxu0
  %v996 = vmax.f32 %v993, 0.0
  %v997 = vld [vmem:[%s4 + $0x38] sm:$0xff]
  %v998 = vld [vmem:[%s4 + $0x40] sm:$0xff]
  %v999 = vld [vmem:[%s4 + $0x48] sm:$0xff]
  %v1000 = vld [vmem:[%s4 + $0x50] sm:$0xff]
  %v1001 = vld [vmem:[%s4 + $0x58] sm:$0xff]
  %v1002 = vld [vmem:[%s4 + $0x60] sm:$0xff]
  %v1003 = vld [vmem:[%s4 + $0x68] sm:$0xff]
  %v1004 = vld [vmem:[%s4 + $0x70] sm:$0xff]
  %v1005 = vld [vmem:[%s6 + $0x61] sm:$0x1]
  %v1006 = vld [vmem:[%s5 + $0x120] sm:$0xff]
  %v1007 = vld [vmem:[%s5 + $0x128] sm:$0xff]
  %v1008 = vld [vmem:[%s5 + $0x130] sm:$0xff]
  %v1009 = vld [vmem:[%s5 + $0x138] sm:$0xff]
  %v1010 = vld [vmem:[%s5 + $0x140] sm:$0xff]
  %v1011 = vld [vmem:[%s5 + $0x148] sm:$0xff]
  %v1012 = vld [vmem:[%s5 + $0x150] sm:$0xff]
  %v1013 = vld [vmem:[%s5 + $0x158] sm:$0xff]
  %v1014 = vld [vmem:[%s5 + $0x160] sm:$0xff]
  %v1015 = vld [vmem:[%s5 + $0x168] sm:$0xff]
  %v1016 = vld [vmem:[%s5 + $0x170] sm:$0xff]
  %v1017 = vld [vmem:[%s5 + $0x178] sm:$0xff]
  %v1018 = vld [vmem:[%s5 + $0x180] sm:$0xff]
  %v1019 = vld [vmem:[%s5 + $0x188] sm:$0xff]
  %v1020 = vld [vmem:[%s5 + $0x190] sm:$0xff]
  %v1021 = vld [vmem:[%s5 + $0x198] sm:$0xff]
  %v1022 = vld [vmem:[%s5 + $0x1a0] sm:$0xff]
  %v1023 = vld [vmem:[%s5 + $0x1a8] sm:$0xff]
  %v1024 = vld [vmem:[%s5 + $0x1b0] sm:$0xff]
  %v1025 = vld [vmem:[%s5 + $0x1b8] sm:$0xff]
  %v1026 = vld [vmem:[%s5 + $0x1c0] sm:$0xff]
  %v1027 = vld [vmem:[%s5 + $0x1c8] sm:$0xff]
  %v1028 = vld [vmem:[%s5 + $0x1d0] sm:$0xff]
  %v1029 = vld [vmem:[%s5 + $0x1d8] sm:$0xff]
  %v1030 = vld [vmem:[%s5 + $0x1e0] sm:$0xff]
  %v1031 = vld [vmem:[%s5 + $0x1e8] sm:$0xff]
  %v1032 = vld [vmem:[%s5 + $0x1f0] sm:$0xff]
  %v1033 = vld [vmem:[%s5 + $0x1f8] sm:$0xff]
  %v1034 = vld [vmem:[%s5 + $0x200] sm:$0xff]
  %v1035 = vld [vmem:[%s5 + $0x208] sm:$0xff]
  %v1036 = vld [vmem:[%s5 + $0x210] sm:$0xff]
  %v1037 = vld [vmem:[%s5 + $0x218] sm:$0xff]
  %v1038 = vld [vmem:[%s5 + $0x220] sm:$0xff]
  %v1039 = vld [vmem:[%s5 + $0x228] sm:$0xff]
  %v1040 = vld [vmem:[%s5 + $0x230] sm:$0xff]
  %v1041 = vld [vmem:[%s5 + $0x238] sm:$0xff]
  %v1042 = vld [vmem:[%s5 + $0x240] sm:$0xff]
  %v1043 = vld [vmem:[%s5 + $0x248] sm:$0xff]
  %v1044 = vld [vmem:[%s5 + $0x250] sm:$0xff]
  %v1045 = vld [vmem:[%s5 + $0x258] sm:$0xff]
  %v1046 = vld [vmem:[%s5 + $0x260] sm:$0xff]
  %v1047 = vld [vmem:[%s5 + $0x268] sm:$0xff]
  %v1048 = vld [vmem:[%s5 + $0x270] sm:$0xff]
  %v1049 = vld [vmem:[%s5 + $0x278] sm:$0xff]
  %v1050 = vld [vmem:[%s5 + $0x280] sm:$0xff]
  %v1051 = vld [vmem:[%s5 + $0x288] sm:$0xff]
  %v1052 = vld [vmem:[%s5 + $0x290] sm:$0xff]
  %v1053 = vld [vmem:[%s5 + $0x298] sm:$0xff]
  %v1054 = vld [vmem:[%s5 + $0x2a0] sm:$0xff]
  %v1055 = vld [vmem:[%s5 + $0x2a8] sm:$0xff]
  %v1056 = vld [vmem:[%s5 + $0x2b0] sm:$0xff]
  %v1057 = vld [vmem:[%s5 + $0x2b8] sm:$0xff]
  %v1058 = vld [vmem:[%s5 + $0x2c0] sm:$0xff]
  %v1059 = vld [vmem:[%s5 + $0x2c8] sm:$0xff]
  %v1060 = vld [vmem:[%s5 + $0x2d0] sm:$0xff]
  %v1061 = vld [vmem:[%s5 + $0x2d8] sm:$0xff]
  %v1062 = vld [vmem:[%s5 + $0x2e0] sm:$0xff]
  %v1063 = vld [vmem:[%s5 + $0x2e8] sm:$0xff]
  %v1064 = vld [vmem:[%s5 + $0x2f0] sm:$0xff]
  %v1065 = vld [vmem:[%s5 + $0x2f8] sm:$0xff]
  %v1066 = vld [vmem:[%s5 + $0x300] sm:$0xff]
  %v1067 = vld [vmem:[%s5 + $0x308] sm:$0xff]
  %v1068 = vld [vmem:[%s5 + $0x310] sm:$0xff]
  %v1069 = vld [vmem:[%s5 + $0x318] sm:$0xff]
  %v1070 = vld [vmem:[%s6 + $0x63] sm:$0x1]
  %v1071 = vld [vmem:[%s4 + $0x2b8] sm:$0xff]
  %v1072 = vld [vmem:[%s4 + $0x2c0] sm:$0xff]
  %v1073 = vld [vmem:[%s4 + $0x2c8] sm:$0xff]
  %v1074 = vld [vmem:[%s4 + $0x2d0] sm:$0xff]
  %v1075 = vld [vmem:[%s4 + $0x2d8] sm:$0xff]
  %v1076 = vld [vmem:[%s4 + $0x2e0] sm:$0xff]
  %v1077 = vld [vmem:[%s4 + $0x2e8] sm:$0xff]
  %v1078 = vld [vmem:[%s4 + $0x2f0] sm:$0xff]
  %v1079 = vld [vmem:[%s4 + $0x2f8] sm:$0xff]
  %v1080 = vld [vmem:[%s4 + $0x300] sm:$0xff]
  %v1081 = vld [vmem:[%s4 + $0x308] sm:$0xff]
  %v1082 = vld [vmem:[%s4 + $0x310] sm:$0xff]
  %v1083 = vld [vmem:[%s4 + $0x318] sm:$0xff]
  %v1084 = vld [vmem:[%s4 + $0x320] sm:$0xff]
  %v1085 = vld [vmem:[%s4 + $0x328] sm:$0xff]
  %v1086 = vld [vmem:[%s4 + $0x330] sm:$0xff]
  %v1087 = vld [vmem:[%s4 + $0x338] sm:$0xff]
  %v1088 = vld [vmem:[%s4 + $0x340] sm:$0xff]
  %v1089 = vld [vmem:[%s4 + $0x348] sm:$0xff]
  %v1090 = vld [vmem:[%s4 + $0x350] sm:$0xff]
  %v1091 = vld [vmem:[%s4 + $0x358] sm:$0xff]
  %v1092 = vld [vmem:[%s4 + $0x360] sm:$0xff]
  %v1093 = vld [vmem:[%s4 + $0x368] sm:$0xff]
  %v1094 = vld [vmem:[%s4 + $0x370] sm:$0xff]
  %v1095 = vld [vmem:[%s4 + $0x378] sm:$0xff]
  %v1096 = vld [vmem:[%s4 + $0x380] sm:$0xff]
  %v1097 = vld [vmem:[%s4 + $0x388] sm:$0xff]
  %v1098 = vld [vmem:[%s4 + $0x390] sm:$0xff]
  %v1099 = vld [vmem:[%s4 + $0x398] sm:$0xff]
  %v1100 = vld [vmem:[%s4 + $0x3a0] sm:$0xff]
  %v1101 = vld [vmem:[%s4 + $0x3a8] sm:$0xff]
  %v1102 = vld [vmem:[%s4 + $0x3b0] sm:$0xff]
  %v1103 = vld [vmem:[%s4 + $0x3b8] sm:$0xff]
  %v1104 = vld [vmem:[%s4 + $0x3c0] sm:$0xff]
  %v1105 = vld [vmem:[%s4 + $0x3c8] sm:$0xff]
  %v1106 = vld [vmem:[%s4 + $0x3d0] sm:$0xff]
  %v1107 = vld [vmem:[%s4 + $0x3d8] sm:$0xff]
  %v1108 = vld [vmem:[%s4 + $0x3e0] sm:$0xff]
  %v1109 = vld [vmem:[%s4 + $0x3e8] sm:$0xff]
  %v1110 = vld [vmem:[%s4 + $0x3f0] sm:$0xff]
  %v1111 = vld [vmem:[%s4 + $0x3f8] sm:$0xff]
  %v1112 = vld [vmem:[%s4 + $0x400] sm:$0xff]
  %v1113 = vld [vmem:[%s4 + $0x408] sm:$0xff]
  %v1114 = vld [vmem:[%s4 + $0x410] sm:$0xff]
  %v1115 = vld [vmem:[%s4 + $0x418] sm:$0xff]
  %v1116 = vld [vmem:[%s4 + $0x420] sm:$0xff]
  %v1117 = vld [vmem:[%s4 + $0x428] sm:$0xff]
  %v1118 = vld [vmem:[%s4 + $0x430] sm:$0xff]
  %v1119 = vld [vmem:[%s4 + $0x438] sm:$0xff]
  %v1120 = vld [vmem:[%s4 + $0x440] sm:$0xff]
  %v1121 = vld [vmem:[%s4 + $0x448] sm:$0xff]
  %v1122 = vld [vmem:[%s4 + $0x450] sm:$0xff]
  %v1123 = vld [vmem:[%s4 + $0x458] sm:$0xff]
  %v1124 = vld [vmem:[%s4 + $0x460] sm:$0xff]
  %v1125 = vld [vmem:[%s4 + $0x468] sm:$0xff]
  %v1126 = vld [vmem:[%s4 + $0x470] sm:$0xff]
  %v1127 = vld [vmem:[%s4 + $0x478] sm:$0xff]
  %v1128 = vld [vmem:[%s4 + $0x480] sm:$0xff]
  %v1129 = vld [vmem:[%s4 + $0x488] sm:$0xff]
  %v1130 = vld [vmem:[%s4 + $0x490] sm:$0xff]
  %v1131 = vld [vmem:[%s4 + $0x498] sm:$0xff]
  %v1132 = vld [vmem:[%s4 + $0x4a0] sm:$0xff]
  %v1133 = vld [vmem:[%s4 + $0x4a8] sm:$0xff]
  %v1134 = vld [vmem:[%s4 + $0x4b0] sm:$0xff]
  %v1135 = vld [vmem:[%s4 + $0x4b8] sm:$0xff]
  %v1136 = vld [vmem:[%s4 + $0x4c0] sm:$0xff]
  %v1137 = vld [vmem:[%s4 + $0x4c8] sm:$0xff]
  %v1138 = vld [vmem:[%s4 + $0x4d0] sm:$0xff]
  %v1139 = vld [vmem:[%s4 + $0x4d8] sm:$0xff]
  %v1140 = vld [vmem:[%s4 + $0x4e0] sm:$0xff]
  %v1141 = vld [vmem:[%s4 + $0x4e8] sm:$0xff]
  %v1142 = vld [vmem:[%s4 + $0x4f0] sm:$0xff]
  %v1143 = vld [vmem:[%s6 + $0x65] sm:$0x1]
  %v1144 = vld [vmem:[%s1] sm:$0xff]
  %v1145 = vld [vmem:[%s1 + $0x8] sm:$0xff]
  %v1146 = vld [vmem:[%s1 + $0x10] sm:$0xff]
  %v1147 = vld [vmem:[%s1 + $0x18] sm:$0xff]
  %v1148 = vld [vmem:[%s1 + $0x20] sm:$0xff]
  %v1149 = vld [vmem:[%s1 + $0x28] sm:$0xff]
  %v1150 = vld [vmem:[%s1 + $0x30] sm:$0xff]
  %v1151 = vld [vmem:[%s1 + $0x38] sm:$0xff]
  %v1152 = vld [vmem:[%s1 + $0x40] sm:$0xff]
  %v1153 = vld [vmem:[%s1 + $0x48] sm:$0xff]
  %v1154 = vld [vmem:[%s1 + $0x50] sm:$0xff]
  %v1155 = vld [vmem:[%s1 + $0x58] sm:$0xff]
  %v1156 = vld [vmem:[%s1 + $0x60] sm:$0xff]
  %v1157 = vld [vmem:[%s1 + $0x68] sm:$0xff]
  %v1158 = vld [vmem:[%s1 + $0x70] sm:$0xff]
  %v1159 = vld [vmem:[%s1 + $0x78] sm:$0xff]
  %v1160 = vld [vmem:[%s1 + $0x80] sm:$0xff]
  %v1161 = vld [vmem:[%s1 + $0x88] sm:$0xff]
  %v1162 = vld [vmem:[%s1 + $0x90] sm:$0xff]
  %v1163 = vld [vmem:[%s1 + $0x98] sm:$0xff]
  %v1164 = vld [vmem:[%s1 + $0xa0] sm:$0xff]
  %v1165 = vld [vmem:[%s1 + $0xa8] sm:$0xff]
  %v1166 = vld [vmem:[%s1 + $0xb0] sm:$0xff]
  %v1167 = vld [vmem:[%s1 + $0xb8] sm:$0xff]
  %v1168 = vld [vmem:[%s1 + $0xc0] sm:$0xff]
  %v1169 = vld [vmem:[%s1 + $0xc8] sm:$0xff]
  %v1170 = vld [vmem:[%s1 + $0xd0] sm:$0xff]
  %v1171 = vld [vmem:[%s1 + $0xd8] sm:$0xff]
  %v1172 = vld [vmem:[%s1 + $0xe0] sm:$0xff]
  %v1173 = vld [vmem:[%s1 + $0xe8] sm:$0xff]
  %v1174 = vld [vmem:[%s1 + $0xf0] sm:$0xff]
  %v1175 = vld [vmem:[%s1 + $0xf8] sm:$0xff]
  %v1176 = vld [vmem:[%s1 + $0x100] sm:$0xff]
  %v1177 = vld [vmem:[%s1 + $0x108] sm:$0xff]
  %v1178 = vld [vmem:[%s1 + $0x110] sm:$0xff]
  %v1179 = vld [vmem:[%s1 + $0x118] sm:$0xff]
  %v1180 = vld [vmem:[%s1 + $0x120] sm:$0xff]
  %v1181 = vld [vmem:[%s1 + $0x128] sm:$0xff]
  %v1182 = vld [vmem:[%s1 + $0x130] sm:$0xff]
  %v1183 = vld [vmem:[%s1 + $0x138] sm:$0xff]
  %v1184 = vld [vmem:[%s1 + $0x140] sm:$0xff]
  %v1185 = vld [vmem:[%s1 + $0x148] sm:$0xff]
  %v1186 = vld [vmem:[%s1 + $0x150] sm:$0xff]
  %v1187 = vld [vmem:[%s1 + $0x158] sm:$0xff]
  %v1188 = vld [vmem:[%s1 + $0x160] sm:$0xff]
  %v1189 = vld [vmem:[%s1 + $0x168] sm:$0xff]
  %v1190 = vld [vmem:[%s1 + $0x170] sm:$0xff]
  %v1191 = vld [vmem:[%s1 + $0x178] sm:$0xff]
  %v1192 = vlaneseq
  %v1193 = vshrl.u32 %v1192, 7
  %v1194 = vsub.s32 0, %v1193
  %v1195 = vrot.slane %v1005, %v1194
  %v1197 = vsel %vm560, %v1144, 0
  %v1200 = vsel %vm560, %v1145, 0
  %v1203 = vsel %vm560, %v1146, 0
  %v1206 = vsel %vm560, %v1147, 0
  %v1209 = vsel %vm560, %v1148, 0
  %v1212 = vsel %vm560, %v1149, 0
  %v1215 = vsel %vm560, %v1150, 0
  %v1218 = vsel %vm560, %v1151, 0
  %v1221 = vsel %vm560, %v1152, 0
  %v1224 = vsel %vm560, %v1153, 0
  %v1227 = vsel %vm560, %v1154, 0
  %v1230 = vsel %vm560, %v1155, 0
  %v1233 = vsel %vm560, %v1156, 0
  %v1236 = vsel %vm560, %v1157, 0
  %v1239 = vsel %vm560, %v1158, 0
  %v1242 = vsel %vm560, %v1159, 0
  %v1245 = vsel %vm560, %v1160, 0
  %v1248 = vsel %vm560, %v1161, 0
  %v1251 = vsel %vm560, %v1162, 0
  %v1254 = vsel %vm560, %v1163, 0
  %v1257 = vsel %vm560, %v1164, 0
  %v1260 = vsel %vm560, %v1165, 0
  %v1263 = vsel %vm560, %v1166, 0
  %v1266 = vsel %vm560, %v1167, 0
  %v1269 = vsel %vm560, %v1168, 0
  %v1272 = vsel %vm560, %v1169, 0
  %v1275 = vsel %vm560, %v1170, 0
  %v1278 = vsel %vm560, %v1171, 0
  %v1281 = vsel %vm560, %v1172, 0
  %v1284 = vsel %vm560, %v1173, 0
  %v1287 = vsel %vm560, %v1174, 0
  %v1290 = vsel %vm560, %v1175, 0
  %v1293 = vsel %vm560, %v1176, 0
  %v1296 = vsel %vm560, %v1177, 0
  %v1299 = vsel %vm560, %v1178, 0
  %v1302 = vsel %vm560, %v1179, 0
  %v1305 = vsel %vm560, %v1180, 0
  %v1308 = vsel %vm560, %v1181, 0
  %v1311 = vsel %vm560, %v1182, 0
  %v1314 = vsel %vm560, %v1183, 0
  %v1317 = vsel %vm560, %v1184, 0
  %v1320 = vsel %vm560, %v1185, 0
  %v1323 = vsel %vm560, %v1186, 0
  %v1326 = vsel %vm560, %v1187, 0
  %v1329 = vsel %vm560, %v1188, 0
  %v1332 = vsel %vm560, %v1189, 0
  %v1335 = vsel %vm560, %v1190, 0
  %v1338 = vsel %vm560, %v1191, 0
  %1340 = vmatprep.subr.mxu0 0.0
  %1341 = vmatpush1.msra.mxu0 0.0
  %1342 = vmatprep.subr.mxu0 0.0
  %1343 = vmatpush1.msra.mxu0 0.0
  %1344 = vmatprep.subr.mxu0 0.0
  %1345 = vmatpush1.msra.mxu0 0.0
  %1346 = vmatprep.subr.mxu0 0.0
  %1347 = vmatpush1.msra.mxu0 0.0
  %1348 = vmatprep.subr.mxu0 0.0
  %1349 = vmatpush1.msra.mxu0 0.0
  %1350 = vmatprep.subr.mxu0 0.0
  %1351 = vmatpush1.msra.mxu0 0.0
  %1352 = vmatprep.subr.mxu0 0.0
  %1353 = vmatpush1.msra.mxu0 0.0
  %1354 = vmatprep.subr.mxu0 0.0
  %1355 = vmatpush1.msra.mxu0 0.0
  %1356 = vmatprep.subr.mxu0 0.0
  %1357 = vmatpush1.msra.mxu0 %v1004
  %1358 = vmatprep.subr.mxu0 0.0
  %1359 = vmatpush1.msra.mxu0 %v1003
  %1360 = vmatprep.subr.mxu0 0.0
  %1361 = vmatpush1.msra.mxu0 %v1002
  %1362 = vmatprep.subr.mxu0 0.0
  %1363 = vmatpush1.msra.mxu0 %v1001
  %1364 = vmatprep.subr.mxu0 0.0
  %1365 = vmatpush1.msra.mxu0 %v1000
  %1366 = vmatprep.subr.mxu0 0.0
  %1367 = vmatpush1.msra.mxu0 %v999
  %1368 = vmatprep.subr.mxu0 0.0
  %1369 = vmatpush1.msra.mxu0 %v998
  %1370 = vmatprep.subr.mxu0 0.0
  %1371 = vmatpush1.msra.mxu0 %v997
  %1372 = vmatprep.subr.mxu0 0.0
  %1373 = vmatpush2.msra.mxu0 0.0
  %1374 = vmatprep.subr.mxu0 0.0
  %1375 = vmatpush2.msra.mxu0 0.0
  %1376 = vmatprep.subr.mxu0 0.0
  %1377 = vmatpush2.msra.mxu0 0.0
  %1378 = vmatprep.subr.mxu0 0.0
  %1379 = vmatpush2.msra.mxu0 0.0
  %1380 = vmatprep.subr.mxu0 0.0
  %1381 = vmatpush2.msra.mxu0 0.0
  %1382 = vmatprep.subr.mxu0 0.0
  %1383 = vmatpush2.msra.mxu0 0.0
  %1384 = vmatprep.subr.mxu0 0.0
  %1385 = vmatpush2.msra.mxu0 0.0
  %1386 = vmatprep.subr.mxu0 0.0
  %1387 = vmatpush2.msra.mxu0 0.0
  %1388 = vmatprep.subr.mxu0 0.0
  %1389 = vmatpush2.msra.mxu0 0.0
  %1390 = vmatprep.subr.mxu0 0.0
  %1391 = vmatpush2.msra.mxu0 0.0
  %1392 = vmatprep.subr.mxu0 0.0
  %1393 = vmatpush2.msra.mxu0 0.0
  %1394 = vmatprep.subr.mxu0 0.0
  %1395 = vmatpush2.msra.mxu0 0.0
  %1396 = vmatprep.subr.mxu0 0.0
  %1397 = vmatpush2.msra.mxu0 0.0
  %1398 = vmatprep.subr.mxu0 0.0
  %1399 = vmatpush2.msra.mxu0 0.0
  %1400 = vmatprep.subr.mxu0 0.0
  %1401 = vmatpush2.msra.mxu0 0.0
  %1402 = vmatprep.subr.mxu0 0.0
  %1403 = vmatpush2.msra.mxu0 0.0
  %1404 = vmatprep.mubr.f32.mxu0 0.0
  %1405 = vmatmul.mubr.f32.gmra.mxu0 %v1197
  %v1406 = vpop.f32.mrf.mxu0
  %v1407 = vadd.f32 %v1195, %v1406
  %v1408 = vpop.f32.mrf.mxu0
  %1409 = vmatprep.mubr.f32.mxu0 0.0
  %1410 = vmatmul.mubr.f32.gmra.mxu0 %v1200
  %v1411 = vpop.f32.mrf.mxu0
  %v1412 = vadd.f32 %v1195, %v1411
  %v1413 = vpop.f32.mrf.mxu0
  %1414 = vmatprep.mubr.f32.mxu0 0.0
  %1415 = vmatmul.mubr.f32.gmra.mxu0 %v1203
  %v1416 = vpop.f32.mrf.mxu0
  %v1417 = vadd.f32 %v1195, %v1416
  %v1418 = vpop.f32.mrf.mxu0
  %1419 = vmatprep.mubr.f32.mxu0 0.0
  %1420 = vmatmul.mubr.f32.gmra.mxu0 %v1206
  %v1421 = vpop.f32.mrf.mxu0
  %v1422 = vadd.f32 %v1195, %v1421
  %v1423 = vpop.f32.mrf.mxu0
  %1424 = vmatprep.mubr.f32.mxu0 0.0
  %1425 = vmatmul.mubr.f32.gmra.mxu0 %v1209
  %v1426 = vpop.f32.mrf.mxu0
  %v1427 = vadd.f32 %v1195, %v1426
  %v1428 = vpop.f32.mrf.mxu0
  %1429 = vmatprep.mubr.f32.mxu0 0.0
  %1430 = vmatmul.mubr.f32.gmra.mxu0 %v1212
  %v1431 = vpop.f32.mrf.mxu0
  %v1432 = vadd.f32 %v1195, %v1431
  %v1433 = vpop.f32.mrf.mxu0
  %1434 = vmatprep.mubr.f32.mxu0 0.0
  %1435 = vmatmul.mubr.f32.gmra.mxu0 %v1215
  %v1436 = vpop.f32.mrf.mxu0
  %v1437 = vadd.f32 %v1195, %v1436
  %v1438 = vpop.f32.mrf.mxu0
  %1439 = vmatprep.mubr.f32.mxu0 0.0
  %1440 = vmatmul.mubr.f32.gmra.mxu0 %v1218
  %v1441 = vpop.f32.mrf.mxu0
  %v1442 = vadd.f32 %v1195, %v1441
  %v1443 = vpop.f32.mrf.mxu0
  %1444 = vmatprep.mubr.f32.mxu0 0.0
  %1445 = vmatmul.mubr.f32.gmra.mxu0 %v1221
  %v1446 = vpop.f32.mrf.mxu0
  %v1447 = vadd.f32 %v1195, %v1446
  %v1448 = vpop.f32.mrf.mxu0
  %1449 = vmatprep.mubr.f32.mxu0 0.0
  %1450 = vmatmul.mubr.f32.gmra.mxu0 %v1224
  %v1451 = vpop.f32.mrf.mxu0
  %v1452 = vadd.f32 %v1195, %v1451
  %v1453 = vpop.f32.mrf.mxu0
  %1454 = vmatprep.mubr.f32.mxu0 0.0
  %1455 = vmatmul.mubr.f32.gmra.mxu0 %v1227
  %v1456 = vpop.f32.mrf.mxu0
  %v1457 = vadd.f32 %v1195, %v1456
  %v1458 = vpop.f32.mrf.mxu0
  %1459 = vmatprep.mubr.f32.mxu0 0.0
  %1460 = vmatmul.mubr.f32.gmra.mxu0 %v1230
  %v1461 = vpop.f32.mrf.mxu0
  %v1462 = vadd.f32 %v1195, %v1461
  %v1463 = vpop.f32.mrf.mxu0
  %1464 = vmatprep.mubr.f32.mxu0 0.0
  %1465 = vmatmul.mubr.f32.gmra.mxu0 %v1233
  %v1466 = vpop.f32.mrf.mxu0
  %v1467 = vadd.f32 %v1195, %v1466
  %v1468 = vpop.f32.mrf.mxu0
  %1469 = vmatprep.mubr.f32.mxu0 0.0
  %1470 = vmatmul.mubr.f32.gmra.mxu0 %v1236
  %v1471 = vpop.f32.mrf.mxu0
  %v1472 = vadd.f32 %v1195, %v1471
  %v1473 = vpop.f32.mrf.mxu0
  %1474 = vmatprep.mubr.f32.mxu0 0.0
  %1475 = vmatmul.mubr.f32.gmra.mxu0 %v1239
  %v1476 = vpop.f32.mrf.mxu0
  %v1477 = vadd.f32 %v1195, %v1476
  %v1478 = vpop.f32.mrf.mxu0
  %1479 = vmatprep.mubr.f32.mxu0 0.0
  %1480 = vmatmul.mubr.f32.gmra.mxu0 %v1242
  %v1481 = vpop.f32.mrf.mxu0
  %v1482 = vadd.f32 %v1195, %v1481
  %v1483 = vpop.f32.mrf.mxu0
  %1484 = vmatprep.mubr.f32.mxu0 0.0
  %1485 = vmatmul.mubr.f32.gmra.mxu0 %v1245
  %v1486 = vpop.f32.mrf.mxu0
  %v1487 = vadd.f32 %v1195, %v1486
  %v1488 = vpop.f32.mrf.mxu0
  %1489 = vmatprep.mubr.f32.mxu0 0.0
  %1490 = vmatmul.mubr.f32.gmra.mxu0 %v1248
  %v1491 = vpop.f32.mrf.mxu0
  %v1492 = vadd.f32 %v1195, %v1491
  %v1493 = vpop.f32.mrf.mxu0
  %1494 = vmatprep.mubr.f32.mxu0 0.0
  %1495 = vmatmul.mubr.f32.gmra.mxu0 %v1251
  %v1496 = vpop.f32.mrf.mxu0
  %v1497 = vadd.f32 %v1195, %v1496
  %v1498 = vpop.f32.mrf.mxu0
  %1499 = vmatprep.mubr.f32.mxu0 0.0
  %1500 = vmatmul.mubr.f32.gmra.mxu0 %v1254
  %v1501 = vpop.f32.mrf.mxu0
  %v1502 = vadd.f32 %v1195, %v1501
  %v1503 = vpop.f32.mrf.mxu0
  %1504 = vmatprep.mubr.f32.mxu0 0.0
  %1505 = vmatmul.mubr.f32.gmra.mxu0 %v1257
  %v1506 = vpop.f32.mrf.mxu0
  %v1507 = vadd.f32 %v1195, %v1506
  %v1508 = vpop.f32.mrf.mxu0
  %1509 = vmatprep.mubr.f32.mxu0 0.0
  %1510 = vmatmul.mubr.f32.gmra.mxu0 %v1260
  %v1511 = vpop.f32.mrf.mxu0
  %v1512 = vadd.f32 %v1195, %v1511
  %v1513 = vpop.f32.mrf.mxu0
  %1514 = vmatprep.mubr.f32.mxu0 0.0
  %1515 = vmatmul.mubr.f32.gmra.mxu0 %v1263
  %v1516 = vpop.f32.mrf.mxu0
  %v1517 = vadd.f32 %v1195, %v1516
  %v1518 = vpop.f32.mrf.mxu0
  %1519 = vmatprep.mubr.f32.mxu0 0.0
  %1520 = vmatmul.mubr.f32.gmra.mxu0 %v1266
  %v1521 = vpop.f32.mrf.mxu0
  %v1522 = vadd.f32 %v1195, %v1521
  %v1523 = vpop.f32.mrf.mxu0
  %1524 = vmatprep.mubr.f32.mxu0 0.0
  %1525 = vmatmul.mubr.f32.gmra.mxu0 %v1269
  %v1526 = vpop.f32.mrf.mxu0
  %v1527 = vadd.f32 %v1195, %v1526
  %v1528 = vpop.f32.mrf.mxu0
  %1529 = vmatprep.mubr.f32.mxu0 0.0
  %1530 = vmatmul.mubr.f32.gmra.mxu0 %v1272
  %v1531 = vpop.f32.mrf.mxu0
  %v1532 = vadd.f32 %v1195, %v1531
  %v1533 = vpop.f32.mrf.mxu0
  %1534 = vmatprep.mubr.f32.mxu0 0.0
  %1535 = vmatmul.mubr.f32.gmra.mxu0 %v1275
  %v1536 = vpop.f32.mrf.mxu0
  %v1537 = vadd.f32 %v1195, %v1536
  %v1538 = vpop.f32.mrf.mxu0
  %1539 = vmatprep.mubr.f32.mxu0 0.0
  %1540 = vmatmul.mubr.f32.gmra.mxu0 %v1278
  %v1541 = vpop.f32.mrf.mxu0
  %v1542 = vadd.f32 %v1195, %v1541
  %v1543 = vpop.f32.mrf.mxu0
  %1544 = vmatprep.mubr.f32.mxu0 0.0
  %1545 = vmatmul.mubr.f32.gmra.mxu0 %v1281
  %v1546 = vpop.f32.mrf.mxu0
  %v1547 = vadd.f32 %v1195, %v1546
  %v1548 = vpop.f32.mrf.mxu0
  %1549 = vmatprep.mubr.f32.mxu0 0.0
  %1550 = vmatmul.mubr.f32.gmra.mxu0 %v1284
  %v1551 = vpop.f32.mrf.mxu0
  %v1552 = vadd.f32 %v1195, %v1551
  %v1553 = vpop.f32.mrf.mxu0
  %1554 = vmatprep.mubr.f32.mxu0 0.0
  %1555 = vmatmul.mubr.f32.gmra.mxu0 %v1287
  %v1556 = vpop.f32.mrf.mxu0
  %v1557 = vadd.f32 %v1195, %v1556
  %v1558 = vpop.f32.mrf.mxu0
  %1559 = vmatprep.mubr.f32.mxu0 0.0
  %1560 = vmatmul.mubr.f32.gmra.mxu0 %v1290
  %v1561 = vpop.f32.mrf.mxu0
  %v1562 = vadd.f32 %v1195, %v1561
  %v1563 = vpop.f32.mrf.mxu0
  %1564 = vmatprep.mubr.f32.mxu0 0.0
  %1565 = vmatmul.mubr.f32.gmra.mxu0 %v1293
  %v1566 = vpop.f32.mrf.mxu0
  %v1567 = vadd.f32 %v1195, %v1566
  %v1568 = vpop.f32.mrf.mxu0
  %1569 = vmatprep.mubr.f32.mxu0 0.0
  %1570 = vmatmul.mubr.f32.gmra.mxu0 %v1296
  %v1571 = vpop.f32.mrf.mxu0
  %v1572 = vadd.f32 %v1195, %v1571
  %v1573 = vpop.f32.mrf.mxu0
  %1574 = vmatprep.mubr.f32.mxu0 0.0
  %1575 = vmatmul.mubr.f32.gmra.mxu0 %v1299
  %v1576 = vpop.f32.mrf.mxu0
  %v1577 = vadd.f32 %v1195, %v1576
  %v1578 = vpop.f32.mrf.mxu0
  %1579 = vmatprep.mubr.f32.mxu0 0.0
  %1580 = vmatmul.mubr.f32.gmra.mxu0 %v1302
  %v1581 = vpop.f32.mrf.mxu0
  %v1582 = vadd.f32 %v1195, %v1581
  %v1583 = vpop.f32.mrf.mxu0
  %1584 = vmatprep.mubr.f32.mxu0 0.0
  %1585 = vmatmul.mubr.f32.gmra.mxu0 %v1305
  %v1586 = vpop.f32.mrf.mxu0
  %v1587 = vadd.f32 %v1195, %v1586
  %v1588 = vpop.f32.mrf.mxu0
  %1589 = vmatprep.mubr.f32.mxu0 0.0
  %1590 = vmatmul.mubr.f32.gmra.mxu0 %v1308
  %v1591 = vpop.f32.mrf.mxu0
  %v1592 = vadd.f32 %v1195, %v1591
  %v1593 = vpop.f32.mrf.mxu0
  %1594 = vmatprep.mubr.f32.mxu0 0.0
  %1595 = vmatmul.mubr.f32.gmra.mxu0 %v1311
  %v1596 = vpop.f32.mrf.mxu0
  %v1597 = vadd.f32 %v1195, %v1596
  %v1598 = vpop.f32.mrf.mxu0
  %1599 = vmatprep.mubr.f32.mxu0 0.0
  %1600 = vmatmul.mubr.f32.gmra.mxu0 %v1314
  %v1601 = vpop.f32.mrf.mxu0
  %v1602 = vadd.f32 %v1195, %v1601
  %v1603 = vpop.f32.mrf.mxu0
  %1604 = vmatprep.mubr.f32.mxu0 0.0
  %1605 = vmatmul.mubr.f32.gmra.mxu0 %v1317
  %v1606 = vpop.f32.mrf.mxu0
  %v1607 = vadd.f32 %v1195, %v1606
  %v1608 = vpop.f32.mrf.mxu0
  %1609 = vmatprep.mubr.f32.mxu0 0.0
  %1610 = vmatmul.mubr.f32.gmra.mxu0 %v1320
  %v1611 = vpop.f32.mrf.mxu0
  %v1612 = vadd.f32 %v1195, %v1611
  %v1613 = vpop.f32.mrf.mxu0
  %1614 = vmatprep.mubr.f32.mxu0 0.0
  %1615 = vmatmul.mubr.f32.gmra.mxu0 %v1323
  %v1616 = vpop.f32.mrf.mxu0
  %v1617 = vadd.f32 %v1195, %v1616
  %v1618 = vpop.f32.mrf.mxu0
  %1619 = vmatprep.mubr.f32.mxu0 0.0
  %1620 = vmatmul.mubr.f32.gmra.mxu0 %v1326
  %v1621 = vpop.f32.mrf.mxu0
  %v1622 = vadd.f32 %v1195, %v1621
  %v1623 = vpop.f32.mrf.mxu0
  %1624 = vmatprep.mubr.f32.mxu0 0.0
  %1625 = vmatmul.mubr.f32.gmra.mxu0 %v1329
  %v1626 = vpop.f32.mrf.mxu0
  %v1627 = vadd.f32 %v1195, %v1626
  %v1628 = vpop.f32.mrf.mxu0
  %1629 = vmatprep.mubr.f32.mxu0 0.0
  %1630 = vmatmul.mubr.f32.gmra.mxu0 %v1332
  %v1631 = vpop.f32.mrf.mxu0
  %v1632 = vadd.f32 %v1195, %v1631
  %v1633 = vpop.f32.mrf.mxu0
  %1634 = vmatprep.mubr.f32.mxu0 0.0
  %1635 = vmatmul.mubr.f32.gmra.mxu0 %v1335
  %v1636 = vpop.f32.mrf.mxu0
  %v1637 = vadd.f32 %v1195, %v1636
  %v1638 = vpop.f32.mrf.mxu0
  %1639 = vmatprep.mubr.f32.mxu0 0.0
  %1640 = vmatmul.mubr.f32.gmra.mxu0 %v1338
  %v1641 = vpop.f32.mrf.mxu0
  %v1642 = vadd.f32 %v1195, %v1641
  %v1643 = vpop.f32.mrf.mxu0
  %1644 = vdwg.mxu0
  %v1645 = vmax.f32 %v1407, 0.0
  %v1646 = vmax.f32 %v1412, 0.0
  %v1647 = vmax.f32 %v1417, 0.0
  %v1648 = vmax.f32 %v1422, 0.0
  %v1649 = vmax.f32 %v1427, 0.0
  %v1650 = vmax.f32 %v1432, 0.0
  %v1651 = vmax.f32 %v1437, 0.0
  %v1652 = vmax.f32 %v1442, 0.0
  %v1653 = vmax.f32 %v1447, 0.0
  %v1654 = vmax.f32 %v1452, 0.0
  %v1655 = vmax.f32 %v1457, 0.0
  %v1656 = vmax.f32 %v1462, 0.0
  %v1657 = vmax.f32 %v1467, 0.0
  %v1658 = vmax.f32 %v1472, 0.0
  %v1659 = vmax.f32 %v1477, 0.0
  %v1660 = vmax.f32 %v1482, 0.0
  %v1661 = vmax.f32 %v1487, 0.0
  %v1662 = vmax.f32 %v1492, 0.0
  %v1663 = vmax.f32 %v1497, 0.0
  %v1664 = vmax.f32 %v1502, 0.0
  %v1665 = vmax.f32 %v1507, 0.0
  %v1666 = vmax.f32 %v1512, 0.0
  %v1667 = vmax.f32 %v1517, 0.0
  %v1668 = vmax.f32 %v1522, 0.0
  %v1669 = vmax.f32 %v1527, 0.0
  %v1670 = vmax.f32 %v1532, 0.0
  %v1671 = vmax.f32 %v1537, 0.0
  %v1672 = vmax.f32 %v1542, 0.0
  %v1673 = vmax.f32 %v1547, 0.0
  %v1674 = vmax.f32 %v1552, 0.0
  %v1675 = vmax.f32 %v1557, 0.0
  %v1676 = vmax.f32 %v1562, 0.0
  %v1677 = vmax.f32 %v1567, 0.0
  %v1678 = vmax.f32 %v1572, 0.0
  %v1679 = vmax.f32 %v1577, 0.0
  %v1680 = vmax.f32 %v1582, 0.0
  %v1681 = vmax.f32 %v1587, 0.0
  %v1682 = vmax.f32 %v1592, 0.0
  %v1683 = vmax.f32 %v1597, 0.0
  %v1684 = vmax.f32 %v1602, 0.0
  %v1685 = vmax.f32 %v1607, 0.0
  %v1686 = vmax.f32 %v1612, 0.0
  %v1687 = vmax.f32 %v1617, 0.0
  %v1688 = vmax.f32 %v1622, 0.0
  %v1689 = vmax.f32 %v1627, 0.0
  %v1690 = vmax.f32 %v1632, 0.0
  %v1691 = vmax.f32 %v1637, 0.0
  %v1692 = vmax.f32 %v1642, 0.0
  %1696 = vrot.lane.b32.xlu0 %v1648, 32
  %v1697 = vpop.permute.xlu0 %1696
  %1698 = vrot.lane.b32.xlu0 %v1649, 32
  %v1699 = vpop.permute.xlu0 %1698
  %1700 = vrot.lane.b32.xlu0 %v1650, 32
  %v1701 = vpop.permute.xlu0 %1700
  %1708 = vrot.lane.b32.xlu0 %v1651, 64
  %v1709 = vpop.permute.xlu0 %1708
  %1710 = vrot.lane.b32.xlu0 %v1652, 64
  %v1711 = vpop.permute.xlu0 %1710
  %1712 = vrot.lane.b32.xlu0 %v1653, 64
  %v1713 = vpop.permute.xlu0 %1712
  %1720 = vrot.lane.b32.xlu0 %v1654, 96
  %v1721 = vpop.permute.xlu0 %1720
  %1722 = vrot.lane.b32.xlu0 %v1655, 96
  %v1723 = vpop.permute.xlu0 %1722
  %1724 = vrot.lane.b32.xlu0 %v1656, 96
  %v1725 = vpop.permute.xlu0 %1724
  %1732 = vrot.lane.b32.xlu0 %v1660, 32
  %v1733 = vpop.permute.xlu0 %1732
  %1734 = vrot.lane.b32.xlu0 %v1661, 32
  %v1735 = vpop.permute.xlu0 %1734
  %1736 = vrot.lane.b32.xlu0 %v1662, 32
  %v1737 = vpop.permute.xlu0 %1736
  %1744 = vrot.lane.b32.xlu0 %v1663, 64
  %v1745 = vpop.permute.xlu0 %1744
  %1746 = vrot.lane.b32.xlu0 %v1664, 64
  %v1747 = vpop.permute.xlu0 %1746
  %1748 = vrot.lane.b32.xlu0 %v1665, 64
  %v1749 = vpop.permute.xlu0 %1748
  %1756 = vrot.lane.b32.xlu0 %v1666, 96
  %v1757 = vpop.permute.xlu0 %1756
  %1758 = vrot.lane.b32.xlu0 %v1667, 96
  %v1759 = vpop.permute.xlu0 %1758
  %1760 = vrot.lane.b32.xlu0 %v1668, 96
  %v1761 = vpop.permute.xlu0 %1760
  %1768 = vrot.lane.b32.xlu0 %v1672, 32
  %v1769 = vpop.permute.xlu0 %1768
  %1770 = vrot.lane.b32.xlu0 %v1673, 32
  %v1771 = vpop.permute.xlu0 %1770
  %1772 = vrot.lane.b32.xlu0 %v1674, 32
  %v1773 = vpop.permute.xlu0 %1772
  %1780 = vrot.lane.b32.xlu0 %v1675, 64
  %v1781 = vpop.permute.xlu0 %1780
  %1782 = vrot.lane.b32.xlu0 %v1676, 64
  %v1783 = vpop.permute.xlu0 %1782
  %1784 = vrot.lane.b32.xlu0 %v1677, 64
  %v1785 = vpop.permute.xlu0 %1784
  %1792 = vrot.lane.b32.xlu0 %v1678, 96
  %v1793 = vpop.permute.xlu0 %1792
  %1794 = vrot.lane.b32.xlu0 %v1679, 96
  %v1795 = vpop.permute.xlu0 %1794
  %1796 = vrot.lane.b32.xlu0 %v1680, 96
  %v1797 = vpop.permute.xlu0 %1796
  %1804 = vrot.lane.b32.xlu0 %v1684, 32
  %v1805 = vpop.permute.xlu0 %1804
  %1806 = vrot.lane.b32.xlu0 %v1685, 32
  %v1807 = vpop.permute.xlu0 %1806
  %1808 = vrot.lane.b32.xlu0 %v1686, 32
  %v1809 = vpop.permute.xlu0 %1808
  %1816 = vrot.lane.b32.xlu0 %v1687, 64
  %v1817 = vpop.permute.xlu0 %1816
  %1818 = vrot.lane.b32.xlu0 %v1688, 64
  %v1819 = vpop.permute.xlu0 %1818
  %1820 = vrot.lane.b32.xlu0 %v1689, 64
  %v1821 = vpop.permute.xlu0 %1820
  %1828 = vrot.lane.b32.xlu0 %v1690, 96
  %v1829 = vpop.permute.xlu0 %1828
  %1830 = vrot.lane.b32.xlu0 %v1691, 96
  %v1831 = vpop.permute.xlu0 %1830
  %1832 = vrot.lane.b32.xlu0 %v1692, 96
  %v1833 = vpop.permute.xlu0 %1832
  %v1837 = vsel %vm556, %v1645, %v1697
  %v1838 = vsel %vm556, %v1646, %v1699
  %v1839 = vsel %vm556, %v1647, %v1701
  %v1840 = vsel %vm560, %v1837, %v1709
  %v1841 = vsel %vm560, %v1838, %v1711
  %v1842 = vsel %vm560, %v1839, %v1713
  %v1843 = vsel %vm564, %v1840, %v1721
  %v1844 = vsel %vm564, %v1841, %v1723
  %v1845 = vsel %vm564, %v1842, %v1725
  %v1846 = vsel %vm556, %v1657, %v1733
  %v1847 = vsel %vm556, %v1658, %v1735
  %v1848 = vsel %vm556, %v1659, %v1737
  %v1849 = vsel %vm560, %v1846, %v1745
  %v1850 = vsel %vm560, %v1847, %v1747
  %v1851 = vsel %vm560, %v1848, %v1749
  %v1852 = vsel %vm564, %v1849, %v1757
  %v1853 = vsel %vm564, %v1850, %v1759
  %v1854 = vsel %vm564, %v1851, %v1761
  %v1855 = vsel %vm556, %v1669, %v1769
  %v1856 = vsel %vm556, %v1670, %v1771
  %v1857 = vsel %vm556, %v1671, %v1773
  %v1858 = vsel %vm560, %v1855, %v1781
  %v1859 = vsel %vm560, %v1856, %v1783
  %v1860 = vsel %vm560, %v1857, %v1785
  %v1861 = vsel %vm564, %v1858, %v1793
  %v1862 = vsel %vm564, %v1859, %v1795
  %v1863 = vsel %vm564, %v1860, %v1797
  %v1864 = vsel %vm556, %v1681, %v1805
  %v1865 = vsel %vm556, %v1682, %v1807
  %v1866 = vsel %vm556, %v1683, %v1809
  %v1867 = vsel %vm560, %v1864, %v1817
  %v1868 = vsel %vm560, %v1865, %v1819
  %v1869 = vsel %vm560, %v1866, %v1821
  %v1870 = vsel %vm564, %v1867, %v1829
  %v1871 = vsel %vm564, %v1868, %v1831
  %v1872 = vsel %vm564, %v1869, %v1833
  %v1873 = vlaneseq
  %v1874 = vshrl.u32 %v1873, 7
  %v1875 = vsub.s32 0, %v1874
  %v1876 = vrot.slane %v1070, %v1875
  %1877 = vmatprep.subr.mxu0 0.0
  %1878 = vmatpush1.msra.mxu0 %v1021
  %1879 = vmatprep.subr.mxu0 0.0
  %1880 = vmatpush1.msra.mxu0 %v1020
  %1881 = vmatprep.subr.mxu0 0.0
  %1882 = vmatpush1.msra.mxu0 %v1019
  %1883 = vmatprep.subr.mxu0 0.0
  %1884 = vmatpush1.msra.mxu0 %v1018
  %1885 = vmatprep.subr.mxu0 0.0
  %1886 = vmatpush1.msra.mxu0 %v1017
  %1887 = vmatprep.subr.mxu0 0.0
  %1888 = vmatpush1.msra.mxu0 %v1016
  %1889 = vmatprep.subr.mxu0 0.0
  %1890 = vmatpush1.msra.mxu0 %v1015
  %1891 = vmatprep.subr.mxu0 0.0
  %1892 = vmatpush1.msra.mxu0 %v1014
  %1893 = vmatprep.subr.mxu0 0.0
  %1894 = vmatpush1.msra.mxu0 %v1013
  %1895 = vmatprep.subr.mxu0 0.0
  %1896 = vmatpush1.msra.mxu0 %v1012
  %1897 = vmatprep.subr.mxu0 0.0
  %1898 = vmatpush1.msra.mxu0 %v1011
  %1899 = vmatprep.subr.mxu0 0.0
  %1900 = vmatpush1.msra.mxu0 %v1010
  %1901 = vmatprep.subr.mxu0 0.0
  %1902 = vmatpush1.msra.mxu0 %v1009
  %1903 = vmatprep.subr.mxu0 0.0
  %1904 = vmatpush1.msra.mxu0 %v1008
  %1905 = vmatprep.subr.mxu0 0.0
  %1906 = vmatpush1.msra.mxu0 %v1007
  %1907 = vmatprep.subr.mxu0 0.0
  %1908 = vmatpush1.msra.mxu0 %v1006
  %1909 = vmatprep.subr.mxu0 0.0
  %1910 = vmatpush2.msra.mxu0 %v1037
  %1911 = vmatprep.subr.mxu0 0.0
  %1912 = vmatpush2.msra.mxu0 %v1036
  %1913 = vmatprep.subr.mxu0 0.0
  %1914 = vmatpush2.msra.mxu0 %v1035
  %1915 = vmatprep.subr.mxu0 0.0
  %1916 = vmatpush2.msra.mxu0 %v1034
  %1917 = vmatprep.subr.mxu0 0.0
  %1918 = vmatpush2.msra.mxu0 %v1033
  %1919 = vmatprep.subr.mxu0 0.0
  %1920 = vmatpush2.msra.mxu0 %v1032
  %1921 = vmatprep.subr.mxu0 0.0
  %1922 = vmatpush2.msra.mxu0 %v1031
  %1923 = vmatprep.subr.mxu0 0.0
  %1924 = vmatpush2.msra.mxu0 %v1030
  %1925 = vmatprep.subr.mxu0 0.0
  %1926 = vmatpush2.msra.mxu0 %v1029
  %1927 = vmatprep.subr.mxu0 0.0
  %1928 = vmatpush2.msra.mxu0 %v1028
  %1929 = vmatprep.subr.mxu0 0.0
  %1930 = vmatpush2.msra.mxu0 %v1027
  %1931 = vmatprep.subr.mxu0 0.0
  %1932 = vmatpush2.msra.mxu0 %v1026
  %1933 = vmatprep.subr.mxu0 0.0
  %1934 = vmatpush2.msra.mxu0 %v1025
  %1935 = vmatprep.subr.mxu0 0.0
  %1936 = vmatpush2.msra.mxu0 %v1024
  %1937 = vmatprep.subr.mxu0 0.0
  %1938 = vmatpush2.msra.mxu0 %v1023
  %1939 = vmatprep.subr.mxu0 0.0
  %1940 = vmatpush2.msra.mxu0 %v1022
  %1941 = vmatprep.mubr.f32.mxu0 %v1852
  %1942 = vmatmul.mubr.f32.gmra.mxu0 %v1843
  %v1943 = vpop.f32.mrf.mxu0
  %v1944 = vadd.f32 %v1876, %v1943
  %v1945 = vpop.f32.mrf.mxu0
  %1946 = vmatprep.mubr.f32.mxu0 %v1853
  %1947 = vmatmul.mubr.f32.gmra.mxu0 %v1844
  %v1948 = vpop.f32.mrf.mxu0
  %v1949 = vadd.f32 %v1876, %v1948
  %v1950 = vpop.f32.mrf.mxu0
  %1951 = vmatprep.mubr.f32.mxu0 %v1854
  %1952 = vmatmul.mubr.f32.gmra.mxu0 %v1845
  %v1953 = vpop.f32.mrf.mxu0
  %v1954 = vadd.f32 %v1876, %v1953
  %v1955 = vpop.f32.mrf.mxu0
  %1956 = vdwg.mxu0
  %1957 = vmatprep.subr.mxu0 0.0
  %1958 = vmatpush1.msra.mxu0 %v1053
  %1959 = vmatprep.subr.mxu0 0.0
  %1960 = vmatpush1.msra.mxu0 %v1052
  %1961 = vmatprep.subr.mxu0 0.0
  %1962 = vmatpush1.msra.mxu0 %v1051
  %1963 = vmatprep.subr.mxu0 0.0
  %1964 = vmatpush1.msra.mxu0 %v1050
  %1965 = vmatprep.subr.mxu0 0.0
  %1966 = vmatpush1.msra.mxu0 %v1049
  %1967 = vmatprep.subr.mxu0 0.0
  %1968 = vmatpush1.msra.mxu0 %v1048
  %1969 = vmatprep.subr.mxu0 0.0
  %1970 = vmatpush1.msra.mxu0 %v1047
  %1971 = vmatprep.subr.mxu0 0.0
  %1972 = vmatpush1.msra.mxu0 %v1046
  %1973 = vmatprep.subr.mxu0 0.0
  %1974 = vmatpush1.msra.mxu0 %v1045
  %1975 = vmatprep.subr.mxu0 0.0
  %1976 = vmatpush1.msra.mxu0 %v1044
  %1977 = vmatprep.subr.mxu0 0.0
  %1978 = vmatpush1.msra.mxu0 %v1043
  %1979 = vmatprep.subr.mxu0 0.0
  %1980 = vmatpush1.msra.mxu0 %v1042
  %1981 = vmatprep.subr.mxu0 0.0
  %1982 = vmatpush1.msra.mxu0 %v1041
  %1983 = vmatprep.subr.mxu0 0.0
  %1984 = vmatpush1.msra.mxu0 %v1040
  %1985 = vmatprep.subr.mxu0 0.0
  %1986 = vmatpush1.msra.mxu0 %v1039
  %1987 = vmatprep.subr.mxu0 0.0
  %1988 = vmatpush1.msra.mxu0 %v1038
  %1989 = vmatprep.subr.mxu0 0.0
  %1990 = vmatpush2.msra.mxu0 %v1069
  %1991 = vmatprep.subr.mxu0 0.0
  %1992 = vmatpush2.msra.mxu0 %v1068
  %1993 = vmatprep.subr.mxu0 0.0
  %1994 = vmatpush2.msra.mxu0 %v1067
  %1995 = vmatprep.subr.mxu0 0.0
  %1996 = vmatpush2.msra.mxu0 %v1066
  %1997 = vmatprep.subr.mxu0 0.0
  %1998 = vmatpush2.msra.mxu0 %v1065
  %1999 = vmatprep.subr.mxu0 0.0
  %2000 = vmatpush2.msra.mxu0 %v1064
  %2001 = vmatprep.subr.mxu0 0.0
  %2002 = vmatpush2.msra.mxu0 %v1063
  %2003 = vmatprep.subr.mxu0 0.0
  %2004 = vmatpush2.msra.mxu0 %v1062
  %2005 = vmatprep.subr.mxu0 0.0
  %2006 = vmatpush2.msra.mxu0 %v1061
  %2007 = vmatprep.subr.mxu0 0.0
  %2008 = vmatpush2.msra.mxu0 %v1060
  %2009 = vmatprep.subr.mxu0 0.0
  %2010 = vmatpush2.msra.mxu0 %v1059
  %2011 = vmatprep.subr.mxu0 0.0
  %2012 = vmatpush2.msra.mxu0 %v1058
  %2013 = vmatprep.subr.mxu0 0.0
  %2014 = vmatpush2.msra.mxu0 %v1057
  %2015 = vmatprep.subr.mxu0 0.0
  %2016 = vmatpush2.msra.mxu0 %v1056
  %2017 = vmatprep.subr.mxu0 0.0
  %2018 = vmatpush2.msra.mxu0 %v1055
  %2019 = vmatprep.subr.mxu0 0.0
  %2020 = vmatpush2.msra.mxu0 %v1054
  %2021 = vmatprep.mubr.f32.mxu0 %v1870
  %2022 = vmatmul.mubr.f32.gmra.mxu0 %v1861
  %v2023 = vpop.f32.mrf.mxu0
  %v2024 = vadd.f32 %v1944, %v2023
  %v2025 = vpop.f32.mrf.mxu0
  %2026 = vmatprep.mubr.f32.mxu0 %v1871
  %2027 = vmatmul.mubr.f32.gmra.mxu0 %v1862
  %v2028 = vpop.f32.mrf.mxu0
  %v2029 = vadd.f32 %v1949, %v2028
  %v2030 = vpop.f32.mrf.mxu0
  %2031 = vmatprep.mubr.f32.mxu0 %v1872
  %2032 = vmatmul.mubr.f32.gmra.mxu0 %v1863
  %v2033 = vpop.f32.mrf.mxu0
  %v2034 = vadd.f32 %v1954, %v2033
  %v2035 = vpop.f32.mrf.mxu0
  %2036 = vdwg.mxu0
  %v2037 = vmax.f32 %v2024, 0.0
  %v2038 = vmax.f32 %v2029, 0.0
  %v2039 = vmax.f32 %v2034, 0.0
  %v2041 = vrot.slane %v2037, 2
  %2042 = vrot.lane.b32.xlu0 %v2041, 64
  %v2043 = vpop.permute.xlu0 %2042
  %v2045 = vrot.slane %v2037, 4
  %v2047 = vrot.slane %v2037, 6
  %2048 = vrot.lane.b32.xlu0 %v2047, 64
  %v2049 = vpop.permute.xlu0 %2048
  %v2052 = vrot.slane %v2038, 2
  %2053 = vrot.lane.b32.xlu0 %v2052, 64
  %v2054 = vpop.permute.xlu0 %2053
  %v2056 = vrot.slane %v2038, 4
  %v2058 = vrot.slane %v2038, 6
  %2059 = vrot.lane.b32.xlu0 %v2058, 64
  %v2060 = vpop.permute.xlu0 %2059
  %v2062 = vsel %vm560, %v2037, %v2043
  %v2063 = vsel %vm560, %v2045, %v2049
  %v2064 = vsel %vm560, %v2038, %v2054
  %v2065 = vsel %vm560, %v2056, %v2060
  %v2066 = vlaneseq
  %v2067 = vshrl.u32 %v2066, 7
  %v2068 = vsub.s32 0, %v2067
  %v2069 = vrot.slane %v1143, %v2068
  %v2071 = vsel %vm560, %v2039, 0
  %2073 = vmatprep.subr.mxu0 0.0
  %2074 = vmatpush1.msra.mxu0 %v1086
  %2075 = vmatprep.subr.mxu0 0.0
  %2076 = vmatpush1.msra.mxu0 %v1085
  %2077 = vmatprep.subr.mxu0 0.0
  %2078 = vmatpush1.msra.mxu0 %v1084
  %2079 = vmatprep.subr.mxu0 0.0
  %2080 = vmatpush1.msra.mxu0 %v1083
  %2081 = vmatprep.subr.mxu0 0.0
  %2082 = vmatpush1.msra.mxu0 %v1082
  %2083 = vmatprep.subr.mxu0 0.0
  %2084 = vmatpush1.msra.mxu0 %v1081
  %2085 = vmatprep.subr.mxu0 0.0
  %2086 = vmatpush1.msra.mxu0 %v1080
  %2087 = vmatprep.subr.mxu0 0.0
  %2088 = vmatpush1.msra.mxu0 %v1079
  %2089 = vmatprep.subr.mxu0 0.0
  %2090 = vmatpush1.msra.mxu0 %v1078
  %2091 = vmatprep.subr.mxu0 0.0
  %2092 = vmatpush1.msra.mxu0 %v1077
  %2093 = vmatprep.subr.mxu0 0.0
  %2094 = vmatpush1.msra.mxu0 %v1076
  %2095 = vmatprep.subr.mxu0 0.0
  %2096 = vmatpush1.msra.mxu0 %v1075
  %2097 = vmatprep.subr.mxu0 0.0
  %2098 = vmatpush1.msra.mxu0 %v1074
  %2099 = vmatprep.subr.mxu0 0.0
  %2100 = vmatpush1.msra.mxu0 %v1073
  %2101 = vmatprep.subr.mxu0 0.0
  %2102 = vmatpush1.msra.mxu0 %v1072
  %2103 = vmatprep.subr.mxu0 0.0
  %2104 = vmatpush1.msra.mxu0 %v1071
  %2105 = vmatprep.subr.mxu0 0.0
  %2106 = vmatpush2.msra.mxu0 %v1102
  %2107 = vmatprep.subr.mxu0 0.0
  %2108 = vmatpush2.msra.mxu0 %v1101
  %2109 = vmatprep.subr.mxu0 0.0
  %2110 = vmatpush2.msra.mxu0 %v1100
  %2111 = vmatprep.subr.mxu0 0.0
  %2112 = vmatpush2.msra.mxu0 %v1099
  %2113 = vmatprep.subr.mxu0 0.0
  %2114 = vmatpush2.msra.mxu0 %v1098
  %2115 = vmatprep.subr.mxu0 0.0
  %2116 = vmatpush2.msra.mxu0 %v1097
  %2117 = vmatprep.subr.mxu0 0.0
  %2118 = vmatpush2.msra.mxu0 %v1096
  %2119 = vmatprep.subr.mxu0 0.0
  %2120 = vmatpush2.msra.mxu0 %v1095
  %2121 = vmatprep.subr.mxu0 0.0
  %2122 = vmatpush2.msra.mxu0 %v1094
  %2123 = vmatprep.subr.mxu0 0.0
  %2124 = vmatpush2.msra.mxu0 %v1093
  %2125 = vmatprep.subr.mxu0 0.0
  %2126 = vmatpush2.msra.mxu0 %v1092
  %2127 = vmatprep.subr.mxu0 0.0
  %2128 = vmatpush2.msra.mxu0 %v1091
  %2129 = vmatprep.subr.mxu0 0.0
  %2130 = vmatpush2.msra.mxu0 %v1090
  %2131 = vmatprep.subr.mxu0 0.0
  %2132 = vmatpush2.msra.mxu0 %v1089
  %2133 = vmatprep.subr.mxu0 0.0
  %2134 = vmatpush2.msra.mxu0 %v1088
  %2135 = vmatprep.subr.mxu0 0.0
  %2136 = vmatpush2.msra.mxu0 %v1087
  %2137 = vmatprep.mubr.f32.mxu0 %v2063
  %2138 = vmatmul.mubr.f32.gmra.mxu0 %v2062
  %v2139 = vpop.f32.mrf.mxu0
  %v2140 = vadd.f32 %v2069, %v2139
  %v2141 = vpop.f32.mrf.mxu0
  %2142 = vdwg.mxu0
  %2143 = vmatprep.subr.mxu0 0.0
  %2144 = vmatpush1.msra.mxu0 %v1118
  %2145 = vmatprep.subr.mxu0 0.0
  %2146 = vmatpush1.msra.mxu0 %v1117
  %2147 = vmatprep.subr.mxu0 0.0
  %2148 = vmatpush1.msra.mxu0 %v1116
  %2149 = vmatprep.subr.mxu0 0.0
  %2150 = vmatpush1.msra.mxu0 %v1115
  %2151 = vmatprep.subr.mxu0 0.0
  %2152 = vmatpush1.msra.mxu0 %v1114
  %2153 = vmatprep.subr.mxu0 0.0
  %2154 = vmatpush1.msra.mxu0 %v1113
  %2155 = vmatprep.subr.mxu0 0.0
  %2156 = vmatpush1.msra.mxu0 %v1112
  %2157 = vmatprep.subr.mxu0 0.0
  %2158 = vmatpush1.msra.mxu0 %v1111
  %2159 = vmatprep.subr.mxu0 0.0
  %2160 = vmatpush1.msra.mxu0 %v1110
  %2161 = vmatprep.subr.mxu0 0.0
  %2162 = vmatpush1.msra.mxu0 %v1109
  %2163 = vmatprep.subr.mxu0 0.0
  %2164 = vmatpush1.msra.mxu0 %v1108
  %2165 = vmatprep.subr.mxu0 0.0
  %2166 = vmatpush1.msra.mxu0 %v1107
  %2167 = vmatprep.subr.mxu0 0.0
  %2168 = vmatpush1.msra.mxu0 %v1106
  %2169 = vmatprep.subr.mxu0 0.0
  %2170 = vmatpush1.msra.mxu0 %v1105
  %2171 = vmatprep.subr.mxu0 0.0
  %2172 = vmatpush1.msra.mxu0 %v1104
  %2173 = vmatprep.subr.mxu0 0.0
  %2174 = vmatpush1.msra.mxu0 %v1103
  %2175 = vmatprep.subr.mxu0 0.0
  %2176 = vmatpush2.msra.mxu0 %v1134
  %2177 = vmatprep.subr.mxu0 0.0
  %2178 = vmatpush2.msra.mxu0 %v1133
  %2179 = vmatprep.subr.mxu0 0.0
  %2180 = vmatpush2.msra.mxu0 %v1132
  %2181 = vmatprep.subr.mxu0 0.0
  %2182 = vmatpush2.msra.mxu0 %v1131
  %2183 = vmatprep.subr.mxu0 0.0
  %2184 = vmatpush2.msra.mxu0 %v1130
  %2185 = vmatprep.subr.mxu0 0.0
  %2186 = vmatpush2.msra.mxu0 %v1129
  %2187 = vmatprep.subr.mxu0 0.0
  %2188 = vmatpush2.msra.mxu0 %v1128
  %2189 = vmatprep.subr.mxu0 0.0
  %2190 = vmatpush2.msra.mxu0 %v1127
  %2191 = vmatprep.subr.mxu0 0.0
  %2192 = vmatpush2.msra.mxu0 %v1126
  %2193 = vmatprep.subr.mxu0 0.0
  %2194 = vmatpush2.msra.mxu0 %v1125
  %2195 = vmatprep.subr.mxu0 0.0
  %2196 = vmatpush2.msra.mxu0 %v1124
  %2197 = vmatprep.subr.mxu0 0.0
  %2198 = vmatpush2.msra.mxu0 %v1123
  %2199 = vmatprep.subr.mxu0 0.0
  %2200 = vmatpush2.msra.mxu0 %v1122
  %2201 = vmatprep.subr.mxu0 0.0
  %2202 = vmatpush2.msra.mxu0 %v1121
  %2203 = vmatprep.subr.mxu0 0.0
  %2204 = vmatpush2.msra.mxu0 %v1120
  %2205 = vmatprep.subr.mxu0 0.0
  %2206 = vmatpush2.msra.mxu0 %v1119
  %2207 = vmatprep.mubr.f32.mxu0 %v2065
  %2208 = vmatmul.mubr.f32.gmra.mxu0 %v2064
  %v2209 = vpop.f32.mrf.mxu0
  %v2210 = vadd.f32 %v2140, %v2209
  %v2211 = vpop.f32.mrf.mxu0
  %2212 = vdwg.mxu0
  %2213 = vmatprep.subr.mxu0 0.0
  %2214 = vmatpush1.msra.mxu0 0.0
  %2215 = vmatprep.subr.mxu0 0.0
  %2216 = vmatpush1.msra.mxu0 0.0
  %2217 = vmatprep.subr.mxu0 0.0
  %2218 = vmatpush1.msra.mxu0 0.0
  %2219 = vmatprep.subr.mxu0 0.0
  %2220 = vmatpush1.msra.mxu0 0.0
  %2221 = vmatprep.subr.mxu0 0.0
  %2222 = vmatpush1.msra.mxu0 0.0
  %2223 = vmatprep.subr.mxu0 0.0
  %2224 = vmatpush1.msra.mxu0 0.0
  %2225 = vmatprep.subr.mxu0 0.0
  %2226 = vmatpush1.msra.mxu0 0.0
  %2227 = vmatprep.subr.mxu0 0.0
  %2228 = vmatpush1.msra.mxu0 0.0
  %2229 = vmatprep.subr.mxu0 0.0
  %2230 = vmatpush1.msra.mxu0 %v1142
  %2231 = vmatprep.subr.mxu0 0.0
  %2232 = vmatpush1.msra.mxu0 %v1141
  %2233 = vmatprep.subr.mxu0 0.0
  %2234 = vmatpush1.msra.mxu0 %v1140
  %2235 = vmatprep.subr.mxu0 0.0
  %2236 = vmatpush1.msra.mxu0 %v1139
  %2237 = vmatprep.subr.mxu0 0.0
  %2238 = vmatpush1.msra.mxu0 %v1138
  %2239 = vmatprep.subr.mxu0 0.0
  %2240 = vmatpush1.msra.mxu0 %v1137
  %2241 = vmatprep.subr.mxu0 0.0
  %2242 = vmatpush1.msra.mxu0 %v1136
  %2243 = vmatprep.subr.mxu0 0.0
  %2244 = vmatpush1.msra.mxu0 %v1135
  %2245 = vmatprep.subr.mxu0 0.0
  %2246 = vmatpush2.msra.mxu0 0.0
  %2247 = vmatprep.subr.mxu0 0.0
  %2248 = vmatpush2.msra.mxu0 0.0
  %2249 = vmatprep.subr.mxu0 0.0
  %2250 = vmatpush2.msra.mxu0 0.0
  %2251 = vmatprep.subr.mxu0 0.0
  %2252 = vmatpush2.msra.mxu0 0.0
  %2253 = vmatprep.subr.mxu0 0.0
  %2254 = vmatpush2.msra.mxu0 0.0
  %2255 = vmatprep.subr.mxu0 0.0
  %2256 = vmatpush2.msra.mxu0 0.0
  %2257 = vmatprep.subr.mxu0 0.0
  %2258 = vmatpush2.msra.mxu0 0.0
  %2259 = vmatprep.subr.mxu0 0.0
  %2260 = vmatpush2.msra.mxu0 0.0
  %2261 = vmatprep.subr.mxu0 0.0
  %2262 = vmatpush2.msra.mxu0 0.0
  %2263 = vmatprep.subr.mxu0 0.0
  %2264 = vmatpush2.msra.mxu0 0.0
  %2265 = vmatprep.subr.mxu0 0.0
  %2266 = vmatpush2.msra.mxu0 0.0
  %2267 = vmatprep.subr.mxu0 0.0
  %2268 = vmatpush2.msra.mxu0 0.0
  %2269 = vmatprep.subr.mxu0 0.0
  %2270 = vmatpush2.msra.mxu0 0.0
  %2271 = vmatprep.subr.mxu0 0.0
  %2272 = vmatpush2.msra.mxu0 0.0
  %2273 = vmatprep.subr.mxu0 0.0
  %2274 = vmatpush2.msra.mxu0 0.0
  %2275 = vmatprep.subr.mxu0 0.0
  %2276 = vmatpush2.msra.mxu0 0.0
  %2277 = vmatprep.mubr.f32.mxu0 0.0
  %2278 = vmatmul.mubr.f32.gmra.mxu0 %v2071
  %v2279 = vpop.f32.mrf.mxu0
  %v2280 = vadd.f32 %v2210, %v2279
  %v2281 = vpop.f32.mrf.mxu0
  %2282 = vdwg.mxu0
  %v2283 = vmax.f32 %v2280, 0.0
  %v2284 = vld [vmem:[%s2] sm:$0x3]
  %v2285 = vld [vmem:[%s3] sm:$0x3]
  %2287 = vset.pattern.permute.xlu0 0
  %2288 = vperm.xlu0 %2287, %v2285
  %v2289 = vpop.permute.xlu0 %2288
  %v2291 = vmul.f32 %v2284, %v2289
  %2293 = vrot.lane.b32.xlu0 %v2283, 32
  %v2294 = vpop.permute.xlu0 %2293
  %2297 = vrot.lane.b32.xlu0 %v2291, 64
  %v2298 = vpop.permute.xlu0 %2297
  %v2300 = vsel %vm556, %v996, %v2294
  %v2301 = vsel %vm560, %v2300, %v2298
  %v2302 = vld [vmem:[%s6] sm:$0xff]
  %v2303 = vld [vmem:[%s6 + $0x8] sm:$0xff]
  %v2304 = vld [vmem:[%s6 + $0x10] sm:$0xff]
  %v2305 = vld [vmem:[%s6 + $0x18] sm:$0xff]
  %v2306 = vld [vmem:[%s6 + $0x20] sm:$0xff]
  %v2307 = vld [vmem:[%s6 + $0x28] sm:$0xff]
  %v2308 = vld [vmem:[%s6 + $0x30] sm:$0xff]
  %v2309 = vld [vmem:[%s6 + $0x38] sm:$0xff]
  %v2310 = vld [vmem:[%s6 + $0x40] sm:$0xff]
  %v2311 = vld [vmem:[%s6 + $0x48] sm:$0xff]
  %v2312 = vld [vmem:[%s6 + $0x50] sm:$0xff]
  %v2313 = vld [vmem:[%s6 + $0x58] sm:$0xff]
  %v2314 = vld [vmem:[%s6 + $0x66] sm:$0x1]
  %v2315 = vlaneseq
  %v2316 = vshrl.u32 %v2315, 7
  %v2317 = vsub.s32 0, %v2316
  %v2318 = vrot.slane %v2314, %v2317
  %v2320 = vsel %vm564, %v2301, 0
  %2322 = vmatprep.subr.mxu0 0.0
  %2323 = vmatpush1.msra.mxu0 0.0
  %2324 = vmatprep.subr.mxu0 0.0
  %2325 = vmatpush1.msra.mxu0 0.0
  %2326 = vmatprep.subr.mxu0 0.0
  %2327 = vmatpush1.msra.mxu0 0.0
  %2328 = vmatprep.subr.mxu0 0.0
  %2329 = vmatpush1.msra.mxu0 0.0
  %2330 = vmatprep.subr.mxu0 0.0
  %2331 = vmatpush1.msra.mxu0 %v2313
  %2332 = vmatprep.subr.mxu0 0.0
  %2333 = vmatpush1.msra.mxu0 %v2312
  %2334 = vmatprep.subr.mxu0 0.0
  %2335 = vmatpush1.msra.mxu0 %v2311
  %2336 = vmatprep.subr.mxu0 0.0
  %2337 = vmatpush1.msra.mxu0 %v2310
  %2338 = vmatprep.subr.mxu0 0.0
  %2339 = vmatpush1.msra.mxu0 %v2309
  %2340 = vmatprep.subr.mxu0 0.0
  %2341 = vmatpush1.msra.mxu0 %v2308
  %2342 = vmatprep.subr.mxu0 0.0
  %2343 = vmatpush1.msra.mxu0 %v2307
  %2344 = vmatprep.subr.mxu0 0.0
  %2345 = vmatpush1.msra.mxu0 %v2306
  %2346 = vmatprep.subr.mxu0 0.0
  %2347 = vmatpush1.msra.mxu0 %v2305
  %2348 = vmatprep.subr.mxu0 0.0
  %2349 = vmatpush1.msra.mxu0 %v2304
  %2350 = vmatprep.subr.mxu0 0.0
  %2351 = vmatpush1.msra.mxu0 %v2303
  %2352 = vmatprep.subr.mxu0 0.0
  %2353 = vmatpush1.msra.mxu0 %v2302
  %2354 = vmatprep.subr.mxu0 0.0
  %2355 = vmatpush2.msra.mxu0 0.0
  %2356 = vmatprep.subr.mxu0 0.0
  %2357 = vmatpush2.msra.mxu0 0.0
  %2358 = vmatprep.subr.mxu0 0.0
  %2359 = vmatpush2.msra.mxu0 0.0
  %2360 = vmatprep.subr.mxu0 0.0
  %2361 = vmatpush2.msra.mxu0 0.0
  %2362 = vmatprep.subr.mxu0 0.0
  %2363 = vmatpush2.msra.mxu0 0.0
  %2364 = vmatprep.subr.mxu0 0.0
  %2365 = vmatpush2.msra.mxu0 0.0
  %2366 = vmatprep.subr.mxu0 0.0
  %2367 = vmatpush2.msra.mxu0 0.0
  %2368 = vmatprep.subr.mxu0 0.0
  %2369 = vmatpush2.msra.mxu0 0.0
  %2370 = vmatprep.subr.mxu0 0.0
  %2371 = vmatpush2.msra.mxu0 0.0
  %2372 = vmatprep.subr.mxu0 0.0
  %2373 = vmatpush2.msra.mxu0 0.0
  %2374 = vmatprep.subr.mxu0 0.0
  %2375 = vmatpush2.msra.mxu0 0.0
  %2376 = vmatprep.subr.mxu0 0.0
  %2377 = vmatpush2.msra.mxu0 0.0
  %2378 = vmatprep.subr.mxu0 0.0
  %2379 = vmatpush2.msra.mxu0 0.0
  %2380 = vmatprep.subr.mxu0 0.0
  %2381 = vmatpush2.msra.mxu0 0.0
  %2382 = vmatprep.subr.mxu0 0.0
  %2383 = vmatpush2.msra.mxu0 0.0
  %2384 = vmatprep.subr.mxu0 0.0
  %2385 = vmatpush2.msra.mxu0 0.0
  %2386 = vmatprep.mubr.f32.mxu0 0.0
  %2387 = vmatmul.mubr.f32.gmra.mxu0 %v2320
  %v2388 = vpop.f32.mrf.mxu0
  %v2389 = vadd.f32 %v2318, %v2388
  %v2390 = vpop.f32.mrf.mxu0
  %2391 = vdwg.mxu0
  %v2392 = vxor.u32 %v2389, 2147483648
  %v2393 = vmul.f32 %v2392, 1.442695
  %v2394 = vpow.pop %v2393
  %v2395 = vadd.f32 %v2394, 1.0
  %v2396 = vrcp.pop %v2395
  %v2397 = vmul.f32 1.0, %v2396
  %2399 = vrot.lane.b32.xlu0 %v2389, 32
  %v2400 = vpop.permute.xlu0 %2399
  %v2402 = vmul.f32 %v2397, %v2400
  %2404 = vrot.lane.b32.xlu0 %v2402, 64
  %v2405 = vpop.permute.xlu0 %2404
  %v2407 = vadd.f32 %v2389, %v2405
  %v2408 = vtanh.pop %v2407
  %v2409 = vsub.f32 1.0, %v2397
  %2411 = vrot.lane.b32.xlu0 %v2408, 96
  %v2412 = vpop.permute.xlu0 %2411
  %v2414 = vmul.f32 %v2409, %v2412
  %2415 = vrot.lane.b32.xlu0 %v2291, 32
  %v2416 = vpop.permute.xlu0 %2415
  %v2418 = vmul.f32 %v2397, %v2416
  %v2419 = vadd.f32 %v2414, %v2418
  %2421 = vrot.lane.b32.xlu0 %v2419, 96
  %v2422 = vpop.permute.xlu0 %2421
  %vm2424 = vcmask 254976
  %2425 = vst.msk [vmem:[%s7] sm:$0x3] %vm2424, %v2422
  // Predicated region
  $region30: #{audionet_forward.1} parent=0 // pred_check
    _
  $region31: #{audionet_forward.1} parent=0 // pred_check_branch
    %2427 = sbr.rel (0) target = $region33
  $region32: #{audionet_forward.1} parent=0 // pred_region
    _
  $region33: #{audionet_forward.1} parent=0 // pred_fallthru
    _
  // Predicated region
  $region34: #{audionet_forward.1} parent=0 // pred_check
    _
  $region35: #{audionet_forward.1} parent=0 // pred_check_branch
    %2429 = sbr.rel (0) target = $region37
  $region36: #{audionet_forward.1} parent=0 // pred_region
    _
  $region37: #{audionet_forward.1} parent=0 // pred_fallthru
    _

</llo_original>
